<compile_context>
chip_gen: v6e
topology: v6e:2x2x1
jax: 0.10.0
libtpu: 0.0.40
codegen_flags: <defaults>
</compile_context>

<pallas_src>
import math

import numpy as np
import jax
import jax.numpy as jnp
from jax import lax
from jax.experimental import pallas as pl
from jax.experimental.pallas import tpu as pltpu


_VMEM_LIMIT = 64 * 1024 * 1024   # fits every generation (v7x physical = 64 MiB)


# ---------------------------------------------------------------------------
# Small helpers
# ---------------------------------------------------------------------------
def _pick_tile(n, cap):
    """Lane-tile size: multiple of 128, >= 2 blocks when possible (v7x cores)."""
    if n <= 256:
        return n                                   # full-extent block
    t = (((n + 1) // 2 + 127) // 128) * 128
    return min(cap, t)


def _const_spec(shape, index_map, single_buffer):
    """Constant-index (resident) block; single-buffered to not reserve a
    double buffer.  Falls back to a plain BlockSpec if unsupported."""
    if single_buffer:
        try:
            return pl.BlockSpec(shape, index_map, pipeline_mode=pl.Buffered(1))
        except (TypeError, AttributeError):
            pass
    return pl.BlockSpec(shape, index_map)


def _with_const_fallback(run):
    """run(single_buffer_constants) -> result.  Retries with default
    double-buffered constants if single-buffering is rejected at lowering."""
    try:
        return run(True)
    except Exception:                                        # pragma: no cover
        return run(False)


# ---------------------------------------------------------------------------
# Mel spectrogram kernel (|STFT|, power=1, center=False, slaney mel scale)
# ---------------------------------------------------------------------------
def _mel_kernel(frames_ref, win_ref, cos_ref, sin_ref, fb_ref, out_ref):
    # frames_ref: (1, n_fft, tf) bf16, win_ref: (n_fft, 1) bf16,
    # cos/sin: (n_freqs, n_fft) bf16, fb: (n_mels, n_freqs) f32.
    f = frames_ref[0] * win_ref[...]                          # bf16 window fuse
    re = jnp.dot(cos_ref[...], f, preferred_element_type=jnp.float32)
    im = jnp.dot(sin_ref[...], f, preferred_element_type=jnp.float32)
    mag = jnp.sqrt(re * re + im * im)                         # power = 1
    out_ref[...] = jnp.dot(fb_ref[...], mag,
                           preferred_element_type=jnp.float32)[None]


def mel_pallas(frames, win, cos_t, sin_t, fb_t, *, tf_cap=1024):
    """frames: (B, n_fft, F) bf16 (frame index on lanes) -> (B, n_mels, F) f32."""
    B, n_fft, F = map(int, frames.shape)
    n_freqs = int(cos_t.shape[0])
    n_mels = int(fb_t.shape[0])
    tf = _pick_tile(F, tf_cap)
    nf = pl.cdiv(F, tf)

    cost = pl.CostEstimate(
        flops=int(B * F * (4 * n_fft * n_freqs + 2 * n_freqs * n_mels
                           + 4 * n_freqs)),
        transcendentals=int(B * F * n_freqs),
        bytes_accessed=int(2 * frames.size + 2 * (win.size + cos_t.size
                                                  + sin_t.size)
                           + 4 * fb_t.size + 4 * B * n_mels * F))

    def run(single_buffer):
        in_specs = [
            pl.BlockSpec((1, n_fft, tf), lambda b, f: (b, 0, f)),
            _const_spec((n_fft, 1), lambda b, f: (0, 0), single_buffer),
            _const_spec((n_freqs, n_fft), lambda b, f: (0, 0), single_buffer),
            _const_spec((n_freqs, n_fft), lambda b, f: (0, 0), single_buffer),
            _const_spec((n_mels, n_freqs), lambda b, f: (0, 0), single_buffer),
        ]
        return pl.pallas_call(
            _mel_kernel,
            out_shape=jax.ShapeDtypeStruct((B, n_mels, F), jnp.float32),
            grid=(B, nf),
            in_specs=in_specs,
            out_specs=pl.BlockSpec((1, n_mels, tf), lambda b, f: (b, 0, f)),
            compiler_params=pltpu.CompilerParams(
                dimension_semantics=("parallel", "parallel"),
                vmem_limit_bytes=_VMEM_LIMIT),
            cost_estimate=cost,
        )(frames, win, cos_t, sin_t, fb_t)

    return _with_const_fallback(run)


# ---------------------------------------------------------------------------
# Conv2d with in-kernel im2col (phase-split input, roll + matmul accumulate)
# ---------------------------------------------------------------------------
def _phase_split(x_bchw, Kh, Kw, sh, sw, ph, pw):
    """(B, C, H, W) -> bf16 phase grids (B, sh, sw, C, Hg*Wg) + geometry.

    P[b, kh%sh, kw%sw, c, h'*Wg + w'] == padded_x[b, c, h'*sh + kh%sh,
                                                  w'*sw + kw%sw], so the conv
    read for output (ho, wo) and tap (kh, kw) is the flat position
    ho*Wg + wo + (kh//sh)*Wg + (kw//sw) of one phase grid (a static shift)."""
    B, C, H, W = map(int, x_bchw.shape)
    Ho = (H + 2 * ph - Kh) // sh + 1
    Wo = (W + 2 * pw - Kw) // sw + 1
    qh, qw = (Kh - 1) // sh, (Kw - 1) // sw
    Hg, Wg = Ho + qh, Wo + qw
    Hn, Wn = Hg * sh, Wg * sw
    pad_h_hi = max(Hn - H - ph, 0)
    pad_w_hi = max(Wn - W - pw, 0)
    xp = jnp.pad(x_bchw.astype(jnp.bfloat16),
                 ((0, 0), (0, 0), (ph, pad_h_hi), (pw, pad_w_hi)))
    xp = xp[:, :, :Hn, :Wn]
    P = xp.reshape(B, C, Hg, sh, Wg, sw)
    P = jnp.transpose(P, (0, 3, 5, 1, 2, 4)).reshape(B, sh, sw, C, Hg * Wg)
    return P, (Ho, Wo, Hg, Wg)


def _accumulate_conv(p_ref, w_ref, Kh, Kw, sh, sw, Wg, L):
    """sum_{kh,kw} W[kh,kw] @ shifted(phase(kh,kw)) with an f32 accumulator.

    The cyclic shift (pltpu.roll) wraps only into flat positions that are
    cropped later (per-row tail columns / bottom rows), so no masking needed."""
    Cin = int(p_ref.shape[3])
    phases = [[p_ref[0, i, j] for j in range(sw)] for i in range(sh)]
    acc = None
    for kh in range(Kh):
        for kw in range(Kw):
            x = phases[kh % sh][kw % sw]                    # (Cin, L) bf16
            d = (kh // sh) * Wg + (kw // sw)
            if d:
                # x'[p] = x[(p + d) % L]  (== jnp.roll(x, -d) on the lane axis)
                x = pltpu.roll(x, shift=L - d, axis=1)
            w_kk = w_ref[kh * Kw + kw]                      # (Cout, Cin) bf16
            if Cin == 1:                                    # conv0: VPU outer product
                part = w_kk.astype(jnp.float32) * x.astype(jnp.float32)
            else:
                part = jnp.dot(w_kk, x, preferred_element_type=jnp.float32)
            acc = part if acc is None else acc + part
    return acc                                              # (Cout, L) f32


def _make_conv_kernel(Kh, Kw, sh, sw, Wg, L, Lk, fmap_post_act):
    def kernel(p_ref, w_ref, b_ref, fmap_ref, chain_ref):
        pre = _accumulate_conv(p_ref, w_ref, Kh, Kw, sh, sw, Wg, L) + b_ref[...]
        act = jnp.maximum(pre, 0.1 * pre)                   # leaky_relu(0.1)
        fmap_ref[...] = (act if fmap_post_act else pre)[None, :, :Lk]
        chain_ref[...] = act[None, :, :Lk].astype(chain_ref.dtype)
    return kernel


def _make_conv_head_kernel(Kh, Kw, sh, sw, Wg, L, Lk, Ho, Kh3):
    pad3 = (Kh3 - 1) // 2

    def kernel(p_ref, w_ref, b_ref, w3_ref, b3_ref, fmap_ref, head_ref):
        pre = _accumulate_conv(p_ref, w_ref, Kh, Kw, sh, sw, Wg, L) + b_ref[...]
        fmap_ref[...] = pre[None, :, :Lk]                   # conv2 pre-activation
        act = jnp.maximum(pre, 0.1 * pre)
        # Rows >= Ho of the (Hg, Wg) grid layout hold garbage partial sums;
        # zero them so the head's +/-1 row halo reads behave like zero padding.
        pos = lax.broadcasted_iota(jnp.int32, act.shape, 1)
        act = jnp.where(pos < Lk, act, 0.0).astype(jnp.bfloat16)
        # SANConv2d head: (Kh3, 1) kernel, stride 1, padding (pad3, 0).
        hacc = None
        for k3 in range(Kh3):
            part = jnp.dot(w3_ref[k3], act, preferred_element_type=jnp.float32)
            d3 = (k3 - pad3) * Wg
            if d3:
                part = pltpu.roll(part, shift=(-d3) % L, axis=1)
            hacc = part if hacc is None else hacc + part
        head_ref[...] = (hacc + b3_ref[...])[None, :, :Lk]
    return kernel


def conv_pallas(x_bchw, w, b, stride, padding, *, fmap_post_act,
                head_w=None, head_b=None):
    """Conv2d (+ optional fused SAN head) with in-kernel im2col.

    Returns (fmap_f32_nchw, second) where `second` is the bf16 chained
    activation (B, Cout, Ho, Wo), or the head output (B, 1, Ho, Wo) f32 when
    head_w is given (in which case the activation never leaves VMEM)."""
    B, Cin, H, W = map(int, x_bchw.shape)
    Cout, _, Kh, Kw = map(int, w.shape)
    sh, sw = stride
    ph, pw = padding
    P, (Ho, Wo, Hg, Wg) = _phase_split(x_bchw, Kh, Kw, sh, sw, ph, pw)
    L = Hg * Wg
    Lk = Ho * Wg                                            # kept flat length
    w_k = jnp.transpose(w, (2, 3, 0, 1)).reshape(Kh * Kw, Cout, Cin)
    w_k = w_k.astype(jnp.bfloat16)
    b_c = b.reshape(Cout, 1).astype(jnp.float32)

    fused_head = head_w is not None
    if fused_head:
        Kh3 = int(head_w.shape[2])
        w3_k = jnp.transpose(head_w, (2, 0, 1, 3)).reshape(Kh3, 1, Cout)
        w3_k = w3_k.astype(jnp.bfloat16)
        b3_c = head_b.reshape(1, 1).astype(jnp.float32)
        kernel = _make_conv_head_kernel(Kh, Kw, sh, sw, Wg, L, Lk, Ho, Kh3)
        extra_in = (w3_k, b3_c)
        out_shapes = (jax.ShapeDtypeStruct((B, Cout, Lk), jnp.float32),
                      jax.ShapeDtypeStruct((B, 1, Lk), jnp.float32))
        out_specs = (pl.BlockSpec((1, Cout, Lk), lambda bb: (bb, 0, 0)),
                     pl.BlockSpec((1, 1, Lk), lambda bb: (bb, 0, 0)))
        head_flops = 2 * B * Kh3 * Cout * L
    else:
        kernel = _make_conv_kernel(Kh, Kw, sh, sw, Wg, L, Lk, fmap_post_act)
        extra_in = ()
        out_shapes = (jax.ShapeDtypeStruct((B, Cout, Lk), jnp.float32),
                      jax.ShapeDtypeStruct((B, Cout, Lk), jnp.bfloat16))
        out_specs = (pl.BlockSpec((1, Cout, Lk), lambda bb: (bb, 0, 0)),
                     pl.BlockSpec((1, Cout, Lk), lambda bb: (bb, 0, 0)))
        head_flops = 0

    out_bytes = sum(int(np.prod(s.shape)) * np.dtype(s.dtype).itemsize
                    for s in out_shapes)
    cost = pl.CostEstimate(
        flops=int(2 * B * Kh * Kw * Cin * Cout * L + head_flops),
        transcendentals=0,
        bytes_accessed=int(2 * P.size + 2 * w_k.size + 4 * Cout + out_bytes))

    def run(single_buffer):
        in_specs = [
            pl.BlockSpec((1, sh, sw, Cin, L), lambda bb: (bb, 0, 0, 0, 0)),
            _const_spec((Kh * Kw, Cout, Cin), lambda bb: (0, 0, 0), single_buffer),
            _const_spec((Cout, 1), lambda bb: (0, 0), single_buffer),
        ]
        if fused_head:
            in_specs += [
                _const_spec((Kh3, 1, Cout), lambda bb: (0, 0, 0), single_buffer),
                _const_spec((1, 1), lambda bb: (0, 0), single_buffer),
            ]
        # TODO(synk): for very long inputs (huge Ho*Wo per batch element) the
        # flat spatial axis should additionally be tiled with halo'd blocks;
        # at discriminator-layer sizes the per-b slab is only a few MiB.
        return pl.pallas_call(
            kernel,
            out_shape=out_shapes,
            grid=(B,),
            in_specs=in_specs,
            out_specs=out_specs,
            compiler_params=pltpu.CompilerParams(
                dimension_semantics=("parallel",),
                vmem_limit_bytes=_VMEM_LIMIT),
            cost_estimate=cost,
        )(P, w_k, b_c, *extra_in)

    fmap_flat, second_flat = _with_const_fallback(run)
    fmap_nchw = fmap_flat.reshape(B, Cout, Ho, Wg)[:, :, :, :Wo]
    c2 = 1 if fused_head else Cout
    second = second_flat.reshape(B, c2, Ho, Wg)[:, :, :, :Wo]
    return fmap_nchw, second


# ---------------------------------------------------------------------------
# Mel filterbank (torchaudio melscale_fbanks, mel_scale='slaney', norm=None)
# ---------------------------------------------------------------------------
def _hz_to_mel_slaney(f):
    f = np.asarray(f, dtype=np.float64)
    f_sp = 200.0 / 3.0
    mels = f / f_sp
    min_log_hz = 1000.0
    min_log_mel = min_log_hz / f_sp
    logstep = math.log(6.4) / 27.0
    return np.where(f >= min_log_hz,
                    min_log_mel + np.log(np.maximum(f, 1e-10) / min_log_hz) / logstep,
                    mels)


def _mel_to_hz_slaney(m):
    m = np.asarray(m, dtype=np.float64)
    f_sp = 200.0 / 3.0
    freqs = f_sp * m
    min_log_hz = 1000.0
    min_log_mel = min_log_hz / f_sp
    logstep = math.log(6.4) / 27.0
    return np.where(m >= min_log_mel,
                    min_log_hz * np.exp(logstep * (m - min_log_mel)),
                    freqs)


def melscale_fbanks_slaney(n_freqs, f_min, f_max, n_mels, sample_rate):
    all_freqs = np.linspace(0.0, sample_rate // 2, n_freqs)
    m_min = _hz_to_mel_slaney(f_min)
    m_max = _hz_to_mel_slaney(f_max)
    m_pts = np.linspace(m_min, m_max, n_mels + 2)
    f_pts = _mel_to_hz_slaney(m_pts)
    f_diff = f_pts[1:] - f_pts[:-1]
    slopes = f_pts[None, :] - all_freqs[:, None]
    down = -slopes[:, :-2] / f_diff[:-1]
    up = slopes[:, 2:] / f_diff[1:]
    fb = np.maximum(0.0, np.minimum(down, up))
    return fb.astype(np.float32)                            # (n_freqs, n_mels)


# ---------------------------------------------------------------------------
# The discriminator
# ---------------------------------------------------------------------------
class DiscriminatorMelPallas:
    def __init__(self, period, kernel_size=5, stride=3, sampling_rate=44100,
                 n_mels=128, key=jax.random.PRNGKey(0)):
        self.period = period
        self.n_fft = period
        self.hop = period // 2
        self.n_freqs = period // 2 + 1
        self.n_mels = n_mels
        self.kernel_size = kernel_size
        self.stride = stride
        self.pad_h = (kernel_size - 1) * 1 // 2

        # --- MelSpectrogram constants (bf16 DFT / window; f32 filterbank) ---
        n = np.arange(self.n_fft)
        win = 0.5 - 0.5 * np.cos(2.0 * np.pi * n / self.n_fft)   # periodic hann
        self.win_col = jnp.asarray(win.reshape(self.n_fft, 1), jnp.bfloat16)
        k = np.arange(self.n_freqs)
        ang = 2.0 * np.pi * np.outer(n, k) / self.n_fft
        self.cos_t = jnp.asarray(np.cos(ang).T, jnp.bfloat16)    # (n_freqs, n_fft)
        self.sin_t = jnp.asarray((-np.sin(ang)).T, jnp.bfloat16)
        fb = melscale_fbanks_slaney(self.n_freqs, 0.0, sampling_rate / 2.0,
                                    n_mels, sampling_rate)
        self.fb_t = jnp.asarray(fb.T)                            # (n_mels, n_freqs)

        # --- conv weights (weight_norm at init == raw weight) ---
        ks = jax.random.split(key, 8)

        def winit(k_, shape):
            fan_in = shape[1] * shape[2] * shape[3]
            return jax.random.normal(k_, shape, jnp.float32) / math.sqrt(fan_in)

        def binit(k_, cout, fan_in):
            lim = 1.0 / math.sqrt(fan_in)
            return jax.random.uniform(k_, (cout,), jnp.float32, -lim, lim)

        self.w0 = winit(ks[0], (32, 1, kernel_size, 7))
        self.b0 = binit(ks[1], 32, 1 * kernel_size * 7)
        self.w1 = winit(ks[2], (32, 32, kernel_size, 7))
        self.b1 = binit(ks[3], 32, 32 * kernel_size * 7)
        self.w2 = winit(ks[4], (32, 32, kernel_size, 3))
        self.b2 = binit(ks[5], 32, 32 * kernel_size * 3)

        # SANConv2d(32, 1, (3,1), padding=(1,0)): at inference the effective
        # weight is normalize(w) * scale; at init scale == ||w||, so it folds
        # back to the raw weight.  Bias starts at zero but is still applied.
        # TODO(synk): with loaded checkpoints, apply normalize(w) and the
        # per-channel scale separately instead of this init-time fold.
        w_post_raw = winit(ks[6], (1, 32, 3, 1))
        norm = jnp.sqrt(jnp.sum(w_post_raw ** 2, axis=(1, 2, 3), keepdims=True))
        norm = jnp.maximum(norm, 1e-12)
        self.w_post = (w_post_raw / norm) * norm                 # == w_post_raw
        self.b_post = jnp.zeros((1,), jnp.float32)

    def __call__(self, x, flg_train=False):
        # x: (B, 1, T) waveform, like the PyTorch module.
        B = int(x.shape[0])
        wav = x[:, 0, :].astype(jnp.float32)
        T = int(wav.shape[1])
        n_fft, hop = self.n_fft, self.hop

        # --- framing (center=False) via strided reshape views, no gather ---
        F = 1 + (T - n_fft) // hop
        n_even = (F + 1) // 2
        n_odd = F // 2
        ev = wav[:, :n_even * n_fft].reshape(B, n_even, n_fft)
        if n_odd:
            od = wav[:, hop:hop + n_odd * n_fft].reshape(B, n_odd, n_fft)
            if n_odd < n_even:
                od = jnp.concatenate(
                    [od, jnp.zeros((B, 1, n_fft), od.dtype)], axis=1)
            frames = jnp.stack([ev, od], axis=2).reshape(B, 2 * n_even, n_fft)
            frames = frames[:, :F]
        else:
            frames = ev
        frames = jnp.swapaxes(frames, 1, 2).astype(jnp.bfloat16)  # (B, n_fft, F)

        # --- mel spectrogram (windowing, |STFT| and mel projection in-kernel) ---
        mel = mel_pallas(frames, self.win_col, self.cos_t, self.sin_t, self.fb_t)
        x0 = mel[:, None]                                          # (B, 1, n_mels, F)

        fmap = []
        # conv0 -> leaky_relu; fmap[0] = post-activation (f32); bf16 copy chains.
        fm0, ch0 = conv_pallas(x0, self.w0, self.b0, (self.stride, 2),
                               (self.pad_h, 2), fmap_post_act=True)
        fmap.append(fm0)
        # conv1; fmap[1] = pre-activation (f32); leaky_relu output chains (bf16).
        fm1, ch1 = conv_pallas(ch0, self.w1, self.b1, (self.stride, 2),
                               (self.pad_h, 2), fmap_post_act=False)
        fmap.append(fm1)
        # conv2 + SANConv2d head fused: fmap[2] = conv2 pre-activation, the head
        # consumes leaky_relu(conv2) entirely in VMEM and emits the logits.
        # TODO(synk): flg_train=True returns [x_fun, x_dir] which only differ by
        # detach/grad-flow; forward values are identical, so not duplicated here.
        fm2, out3 = conv_pallas(ch1, self.w2, self.b2, (1, 1), (self.pad_h, 2),
                                fmap_post_act=False,
                                head_w=self.w_post, head_b=self.b_post)
        fmap.append(fm2)
        fmap.append(out3)
        out = out3.reshape(B, -1)                                  # flatten(1, -1)
        return out, fmap


if __name__ == "__main__":
    key = jax.random.PRNGKey(0)
    k_params, k_input = jax.random.split(key)

    # Small, consistent shapes: period (= n_fft) 32 -> 17 freq bins, 16 mels,
    # batch 2, 336 samples -> 20 STFT frames (center=False).
    period = 32
    n_mels = 16
    B = 2
    T = period + (period // 2) * 19   # 336

    disc = DiscriminatorMelPallas(period=period, kernel_size=5, stride=3,
                                  sampling_rate=44100, n_mels=n_mels,
                                  key=k_params)

    x = jax.random.normal(k_input, (B, 1, T), dtype=jnp.float32)
    out, fmap = disc(x, flg_train=False)

    jax.block_until_ready(out)
    for f in fmap:
        jax.block_until_ready(f)

    assert out.ndim == 2 and out.shape[0] == B
    assert len(fmap) == 4
    assert all(f.ndim == 4 and f.shape[0] == B for f in fmap)
    assert bool(jnp.all(jnp.isfinite(out)))
    print("KERNEL_OK")
</pallas_src>

<mosaic_0001>
module attributes {stable_mosaic.version = 11 : i64} {
  func.func @_mel_kernel(%arg0: i32, %arg1: i32, %arg2: memref<1x32x20xbf16, #tpu.memory_space<vmem>>, %arg3: memref<32x1xbf16, #tpu.memory_space<vmem>>, %arg4: memref<17x32xbf16, #tpu.memory_space<vmem>>, %arg5: memref<17x32xbf16, #tpu.memory_space<vmem>>, %arg6: memref<16x17xf32, #tpu.memory_space<vmem>>, %arg7: memref<1x16x20xf32, #tpu.memory_space<vmem>>) attributes {dimension_semantics = [#tpu.dimension_semantics<parallel>, #tpu.dimension_semantics<parallel>], iteration_bounds = array<i64: 2, 1>, scalar_prefetch = 0 : i64, scratch_operands = 0 : i64, tpu.core_type = #tpu.core_type<tc>, window_params = [{transform_indices = @transform_0, window_bounds = array<i64: 1, 32, 20>}, {pipeline_mode = #tpu.pipeline_mode<synchronous>, transform_indices = @transform_1, window_bounds = array<i64: 32, 1>}, {pipeline_mode = #tpu.pipeline_mode<synchronous>, transform_indices = @transform_2, window_bounds = array<i64: 17, 32>}, {pipeline_mode = #tpu.pipeline_mode<synchronous>, transform_indices = @transform_3, window_bounds = array<i64: 17, 32>}, {pipeline_mode = #tpu.pipeline_mode<synchronous>, transform_indices = @transform_4, window_bounds = array<i64: 16, 17>}, {transform_indices = @transform_5, window_bounds = array<i64: 1, 16, 20>}]} {
    %c0 = arith.constant 0 : index
    %c0_0 = arith.constant 0 : index
    %c0_1 = arith.constant 0 : index
    %0 = vector.load %arg2[%c0, %c0_0, %c0_1] : memref<1x32x20xbf16, #tpu.memory_space<vmem>>, vector<1x32x20xbf16>
    %1 = vector.shape_cast %0 : vector<1x32x20xbf16> to vector<32x20xbf16>
    %c0_2 = arith.constant 0 : index
    %c0_3 = arith.constant 0 : index
    %2 = vector.load %arg3[%c0_2, %c0_3] : memref<32x1xbf16, #tpu.memory_space<vmem>>, vector<32x1xbf16>
    %3 = vector.broadcast %2 : vector<32x1xbf16> to vector<32x20xbf16>
    %4 = arith.mulf %1, %3 : vector<32x20xbf16>
    %c0_4 = arith.constant 0 : index
    %c0_5 = arith.constant 0 : index
    %5 = vector.load %arg4[%c0_4, %c0_5] : memref<17x32xbf16, #tpu.memory_space<vmem>>, vector<17x32xbf16>
    %cst = arith.constant dense<0.000000e+00> : vector<17x20xf32>
    %6 = tpu.matmul %5, %4, %cst {dimension_numbers = #tpu.dot_dimension_numbers<[1], [0], [0], [1], [0, 0, 1, 1], [], []>} : vector<17x32xbf16>, vector<32x20xbf16>, vector<17x20xf32> -> vector<17x20xf32>
    %c0_6 = arith.constant 0 : index
    %c0_7 = arith.constant 0 : index
    %7 = vector.load %arg5[%c0_6, %c0_7] : memref<17x32xbf16, #tpu.memory_space<vmem>>, vector<17x32xbf16>
    %cst_8 = arith.constant dense<0.000000e+00> : vector<17x20xf32>
    %8 = tpu.matmul %7, %4, %cst_8 {dimension_numbers = #tpu.dot_dimension_numbers<[1], [0], [0], [1], [0, 0, 1, 1], [], []>} : vector<17x32xbf16>, vector<32x20xbf16>, vector<17x20xf32> -> vector<17x20xf32>
    %9 = arith.mulf %6, %6 : vector<17x20xf32>
    %10 = arith.mulf %8, %8 : vector<17x20xf32>
    %11 = arith.addf %9, %10 : vector<17x20xf32>
    %12 = math.sqrt %11 : vector<17x20xf32>
    %c0_9 = arith.constant 0 : index
    %c0_10 = arith.constant 0 : index
    %13 = vector.load %arg6[%c0_9, %c0_10] : memref<16x17xf32, #tpu.memory_space<vmem>>, vector<16x17xf32>
    %cst_11 = arith.constant dense<0.000000e+00> : vector<16x20xf32>
    %14 = tpu.matmul %13, %12, %cst_11 {dimension_numbers = #tpu.dot_dimension_numbers<[1], [0], [0], [1], [0, 0, 1, 1], [], []>} : vector<16x17xf32>, vector<17x20xf32>, vector<16x20xf32> -> vector<16x20xf32>
    %15 = vector.shape_cast %14 : vector<16x20xf32> to vector<1x16x20xf32>
    %c0_12 = arith.constant 0 : index
    %c0_13 = arith.constant 0 : index
    %c0_14 = arith.constant 0 : index
    %16 = vector.load %arg7[%c0_12, %c0_13, %c0_14] : memref<1x16x20xf32, #tpu.memory_space<vmem>>, vector<1x16x20xf32>
    tpu.vector_store %arg7[%c0_12, %c0_13, %c0_14], %15 {strides = array<i32>} : memref<1x16x20xf32, #tpu.memory_space<vmem>>, vector<1x16x20xf32>,
    return
  }
  func.func @transform_0(%arg0: i32, %arg1: i32) -> (i32, i32, i32) {
    %c0_i32 = arith.constant 0 : i32
    %c0_i32_0 = arith.constant 0 : i32
    return %arg0, %c0_i32, %arg1 : i32, i32, i32
  }
  func.func @transform_1(%arg0: i32, %arg1: i32) -> (i32, i32) {
    %c0_i32 = arith.constant 0 : i32
    %c0_i32_0 = arith.constant 0 : i32
    %c0_i32_1 = arith.constant 0 : i32
    return %c0_i32, %c0_i32_0 : i32, i32
  }
  func.func @transform_2(%arg0: i32, %arg1: i32) -> (i32, i32) {
    %c0_i32 = arith.constant 0 : i32
    %c0_i32_0 = arith.constant 0 : i32
    %c0_i32_1 = arith.constant 0 : i32
    return %c0_i32, %c0_i32_0 : i32, i32
  }
  func.func @transform_3(%arg0: i32, %arg1: i32) -> (i32, i32) {
    %c0_i32 = arith.constant 0 : i32
    %c0_i32_0 = arith.constant 0 : i32
    %c0_i32_1 = arith.constant 0 : i32
    return %c0_i32, %c0_i32_0 : i32, i32
  }
  func.func @transform_4(%arg0: i32, %arg1: i32) -> (i32, i32) {
    %c0_i32 = arith.constant 0 : i32
    %c0_i32_0 = arith.constant 0 : i32
    %c0_i32_1 = arith.constant 0 : i32
    return %c0_i32, %c0_i32_0 : i32, i32
  }
  func.func @transform_5(%arg0: i32, %arg1: i32) -> (i32, i32, i32) {
    %c0_i32 = arith.constant 0 : i32
    %c0_i32_0 = arith.constant 0 : i32
    return %arg0, %c0_i32, %arg1 : i32, i32, i32
  }
}

module attributes {stable_mosaic.version = 11 : i64} {
  func.func @_mel_kernel(%arg0: i32, %arg1: i32, %arg2: memref<1x32x20xbf16, #tpu.memory_space<vmem>>, %arg3: memref<32x1xbf16, #tpu.memory_space<vmem>>, %arg4: memref<17x32xbf16, #tpu.memory_space<vmem>>, %arg5: memref<17x32xbf16, #tpu.memory_space<vmem>>, %arg6: memref<16x17xf32, #tpu.memory_space<vmem>>, %arg7: memref<1x16x20xf32, #tpu.memory_space<vmem>>) attributes {dimension_semantics = [#tpu.dimension_semantics<parallel>, #tpu.dimension_semantics<parallel>], iteration_bounds = array<i64: 2, 1>, scalar_prefetch = 0 : i64, scratch_operands = 0 : i64, tpu.core_type = #tpu.core_type<tc>, window_params = [{transform_indices = @transform_0, window_bounds = array<i64: 1, 32, 20>}, {pipeline_mode = #tpu.pipeline_mode<synchronous>, transform_indices = @transform_1, window_bounds = array<i64: 32, 1>}, {pipeline_mode = #tpu.pipeline_mode<synchronous>, transform_indices = @transform_2, window_bounds = array<i64: 17, 32>}, {pipeline_mode = #tpu.pipeline_mode<synchronous>, transform_indices = @transform_3, window_bounds = array<i64: 17, 32>}, {pipeline_mode = #tpu.pipeline_mode<synchronous>, transform_indices = @transform_4, window_bounds = array<i64: 16, 17>}, {transform_indices = @transform_5, window_bounds = array<i64: 1, 16, 20>}]} {
    %c0 = arith.constant 0 : index
    %c0_0 = arith.constant 0 : index
    %c0_1 = arith.constant 0 : index
    %0 = vector.load %arg2[%c0, %c0_0, %c0_1] : memref<1x32x20xbf16, #tpu.memory_space<vmem>>, vector<1x32x20xbf16>
    %1 = vector.shape_cast %0 : vector<1x32x20xbf16> to vector<32x20xbf16>
    %c0_2 = arith.constant 0 : index
    %c0_3 = arith.constant 0 : index
    %2 = vector.load %arg3[%c0_2, %c0_3] : memref<32x1xbf16, #tpu.memory_space<vmem>>, vector<32x1xbf16>
    %3 = vector.broadcast %2 : vector<32x1xbf16> to vector<32x20xbf16>
    %4 = arith.mulf %1, %3 : vector<32x20xbf16>
    %c0_4 = arith.constant 0 : index
    %c0_5 = arith.constant 0 : index
    %5 = vector.load %arg4[%c0_4, %c0_5] : memref<17x32xbf16, #tpu.memory_space<vmem>>, vector<17x32xbf16>
    %cst = arith.constant dense<0.000000e+00> : vector<17x20xf32>
    %6 = tpu.matmul %5, %4, %cst {dimension_numbers = #tpu.dot_dimension_numbers<[1], [0], [0], [1], [0, 0, 1, 1], [], []>} : vector<17x32xbf16>, vector<32x20xbf16>, vector<17x20xf32> -> vector<17x20xf32>
    %c0_6 = arith.constant 0 : index
    %c0_7 = arith.constant 0 : index
    %7 = vector.load %arg5[%c0_6, %c0_7] : memref<17x32xbf16, #tpu.memory_space<vmem>>, vector<17x32xbf16>
    %cst_8 = arith.constant dense<0.000000e+00> : vector<17x20xf32>
    %8 = tpu.matmul %7, %4, %cst_8 {dimension_numbers = #tpu.dot_dimension_numbers<[1], [0], [0], [1], [0, 0, 1, 1], [], []>} : vector<17x32xbf16>, vector<32x20xbf16>, vector<17x20xf32> -> vector<17x20xf32>
    %9 = arith.mulf %6, %6 : vector<17x20xf32>
    %10 = arith.mulf %8, %8 : vector<17x20xf32>
    %11 = arith.addf %9, %10 : vector<17x20xf32>
    %12 = math.sqrt %11 : vector<17x20xf32>
    %c0_9 = arith.constant 0 : index
    %c0_10 = arith.constant 0 : index
    %13 = vector.load %arg6[%c0_9, %c0_10] : memref<16x17xf32, #tpu.memory_space<vmem>>, vector<16x17xf32>
    %cst_11 = arith.constant dense<0.000000e+00> : vector<16x20xf32>
    %14 = tpu.matmul %13, %12, %cst_11 {dimension_numbers = #tpu.dot_dimension_numbers<[1], [0], [0], [1], [0, 0, 1, 1], [], []>} : vector<16x17xf32>, vector<17x20xf32>, vector<16x20xf32> -> vector<16x20xf32>
    %15 = vector.shape_cast %14 : vector<16x20xf32> to vector<1x16x20xf32>
    %c0_12 = arith.constant 0 : index
    %c0_13 = arith.constant 0 : index
    %c0_14 = arith.constant 0 : index
    %16 = vector.load %arg7[%c0_12, %c0_13, %c0_14] : memref<1x16x20xf32, #tpu.memory_space<vmem>>, vector<1x16x20xf32>
    tpu.vector_store %arg7[%c0_12, %c0_13, %c0_14], %15 {strides = array<i32>} : memref<1x16x20xf32, #tpu.memory_space<vmem>>, vector<1x16x20xf32>,
    return
  }
  func.func @transform_0(%arg0: i32, %arg1: i32) -> (i32, i32, i32) {
    %c0_i32 = arith.constant 0 : i32
    %c0_i32_0 = arith.constant 0 : i32
    return %arg0, %c0_i32, %arg1 : i32, i32, i32
  }
  func.func @transform_1(%arg0: i32, %arg1: i32) -> (i32, i32) {
    %c0_i32 = arith.constant 0 : i32
    %c0_i32_0 = arith.constant 0 : i32
    %c0_i32_1 = arith.constant 0 : i32
    return %c0_i32, %c0_i32_0 : i32, i32
  }
  func.func @transform_2(%arg0: i32, %arg1: i32) -> (i32, i32) {
    %c0_i32 = arith.constant 0 : i32
    %c0_i32_0 = arith.constant 0 : i32
    %c0_i32_1 = arith.constant 0 : i32
    return %c0_i32, %c0_i32_0 : i32, i32
  }
  func.func @transform_3(%arg0: i32, %arg1: i32) -> (i32, i32) {
    %c0_i32 = arith.constant 0 : i32
    %c0_i32_0 = arith.constant 0 : i32
    %c0_i32_1 = arith.constant 0 : i32
    return %c0_i32, %c0_i32_0 : i32, i32
  }
  func.func @transform_4(%arg0: i32, %arg1: i32) -> (i32, i32) {
    %c0_i32 = arith.constant 0 : i32
    %c0_i32_0 = arith.constant 0 : i32
    %c0_i32_1 = arith.constant 0 : i32
    return %c0_i32, %c0_i32_0 : i32, i32
  }
  func.func @transform_5(%arg0: i32, %arg1: i32) -> (i32, i32, i32) {
    %c0_i32 = arith.constant 0 : i32
    %c0_i32_0 = arith.constant 0 : i32
    return %arg0, %c0_i32, %arg1 : i32, i32, i32
  }
}

</mosaic_0001>

<llo_original>
// kernel: tpu_custom_call.1
$region0: #{tpu_custom_call.1}
  #allocation0 [shape = 'u32[]', space=smem, size = 0x4, offset = 0x4, fixed_abs, tag = 'smem constant byte address 0x4 - core index']
  #allocation1 [shape = 'u32[144,128]{1,0:T(1,128)}', space=vmem, size = 0x12000, scoped, tag = 'internal scratch']
  %s0 = inlined_call_operand.vmem [shape: bf16[2,32,20], index: 0, kind: input, shape index: {}]
  %s1 = inlined_call_operand.vmem [shape: bf16[32,1], index: 1, kind: input, shape index: {}]
  %s2 = inlined_call_operand.vmem [shape: bf16[17,32], index: 2, kind: input, shape index: {}]
  %s3 = inlined_call_operand.vmem [shape: bf16[17,32], index: 3, kind: input, shape index: {}]
  %s4 = inlined_call_operand.vmem [shape: f32[16,17], index: 4, kind: input, shape index: {}]
  %s5 = inlined_call_operand.hbm [shape: f32[2,16,20], index: 5, kind: output, shape index: {}]
  %s6 = sld [smem:[#allocation0]]
  $region53: #{tpu_custom_call.1} parent=0
    _
  %s8 = ssub.s32 1, %s6
  %s9 = scalar_select 0, %s8, %s6
  $region1: #{tpu_custom_call.1} parent=0
    #allocation2 [shape = 'u8[16384]{0}', space=vmem, size = 0x4000, scoped, tag = 'output window, operand 0']
    #allocation3 [shape = 's32[2]{0}', space=sflag, size = 0x8, scoped, tag = 'scoped memory for tpu_custom_call.1']
    %10 = vsyncpa [#allocation3], 0
    %s11 = scalar_lea.sflag [#allocation3], 1
    %12 = vsyncpa %s11, 0
    loop: start=0, step=1, limit=4
    $region2: #{tpu_custom_call.1} parent=1 // loop_pre_header
      _
    $region3: #{tpu_custom_call.1} parent=1 // loop_header
      %s14 = sphi 0, %s18
      %p15 = scmp.ge.s32.totalorder %s14, 4
      %s21 = sphi 0, %s33
      %s22 = sphi 0, %s29
      %s23 = sphi 0, %s21
      %s24 = sphi 0, %s22
      %s25 = sphi 0, %s23
      %s26 = sphi 0, %s24
      %s38 = sphi 0, %s40
      %s41 = sphi 0, %s38
      %s42 = sphi 0, %s41
      %s58 = sphi 0, %s42
      %s62 = sphi 0, %s62
      %s64 = sphi 0, %s62
      %s65 = sphi 0, %s64
      %s79 = sphi 0, %s65
      %s83 = sphi 0, %s83
      %s85 = sphi 0, %s83
      %s86 = sphi 0, %s85
      %s100 = sphi 0, %s86
      %s104 = sphi 0, %s104
      %s106 = sphi 0, %s104
      %s107 = sphi 0, %s106
      %s121 = sphi 0, %s107
      %s125 = sphi 0, %s125
      %s127 = sphi 0, %s125
      %s128 = sphi 0, %s127
      %s142 = sphi 0, %s128
      %s150 = sphi 0, %s152
      %s153 = sphi 0, %s150
      %s154 = sphi 0, %s153
      %s170 = sphi 0, %s154
    $region4: #{tpu_custom_call.1} parent=1 // loop_header_branch
      %17 = sbr.rel (%p15) target = $region8
    $region5: #{tpu_custom_call.1} parent=1 // loop_body
      %s19 = ssub.s32 %s14, 1
      %s20 = ssub.s32 %s14, 2
      %s27 = sadd.s32 1, %s22
      %p28 = scmp.ge.s32.totalorder %s27, 1
      %s29 = scalar_select %p28, 0, %s27
      %s30 = sadd.s32 1, %s21
      %s31 = scalar_select %p28, %s30, %s21
      %p32 = scmp.ge.s32.totalorder %s31, 2
      %s33 = scalar_select %p32, 0, %s31
      %s34 = ssub.s32 %s21, %s33
      %s35 = ssub.s32 %s22, %s29
      %s36 = sor.u32 %s34, %s35
      %p37 = scmp.eq.s32.totalorder %s36, 0
      %s39 = sadd.s32 %s38, 1
      %s40 = scalar_select %p37, %s38, %s39
      %p43 = pneg %p37
      %p44 = scmp.eq.s32.totalorder %s14, 1
      %p45 = por %p43, %p44
      %p46 = scmp.ne.s32.totalorder %s38, %s41
      %p47 = scmp.eq.s32.totalorder %s14, 0
      %p48 = por %p46, %p47
      %p49 = scmp.ne.s32.totalorder %s38, %s41
      %p50 = scmp.eq.s32.totalorder %s19, 1
      %p51 = por %p49, %p50
      %p52 = scmp.ne.s32.totalorder %s41, %s42
      %p53 = scmp.eq.s32.totalorder %s19, 0
      %p54 = por %p52, %p53
      %p55 = scmp.ne.s32.totalorder %s41, %s42
      %p56 = scmp.eq.s32.totalorder %s20, 1
      %p57 = por %p55, %p56
      %p59 = scmp.ne.s32.totalorder %s42, %s58
      %p60 = scmp.eq.s32.totalorder %s20, 0
      %p61 = por %p59, %p60
      %s63 = sadd.s32 %s62, 1
      %p66 = scmp.eq.s32.totalorder %s14, 1
      %p67 = scmp.ne.s32.totalorder %s62, %s64
      %p68 = scmp.eq.s32.totalorder %s14, 0
      %p69 = por %p67, %p68
      %p70 = scmp.ne.s32.totalorder %s62, %s64
      %p71 = scmp.eq.s32.totalorder %s19, 1
      %p72 = por %p70, %p71
      %p73 = scmp.ne.s32.totalorder %s64, %s65
      %p74 = scmp.eq.s32.totalorder %s19, 0
      %p75 = por %p73, %p74
      %p76 = scmp.ne.s32.totalorder %s64, %s65
      %p77 = scmp.eq.s32.totalorder %s20, 1
      %p78 = por %p76, %p77
      %p80 = scmp.ne.s32.totalorder %s65, %s79
      %p81 = scmp.eq.s32.totalorder %s20, 0
      %p82 = por %p80, %p81
      %s84 = sadd.s32 %s83, 1
      %p87 = scmp.eq.s32.totalorder %s14, 1
      %p88 = scmp.ne.s32.totalorder %s83, %s85
      %p89 = scmp.eq.s32.totalorder %s14, 0
      %p90 = por %p88, %p89
      %p91 = scmp.ne.s32.totalorder %s83, %s85
      %p92 = scmp.eq.s32.totalorder %s19, 1
      %p93 = por %p91, %p92
      %p94 = scmp.ne.s32.totalorder %s85, %s86
      %p95 = scmp.eq.s32.totalorder %s19, 0
      %p96 = por %p94, %p95
      %p97 = scmp.ne.s32.totalorder %s85, %s86
      %p98 = scmp.eq.s32.totalorder %s20, 1
      %p99 = por %p97, %p98
      %p101 = scmp.ne.s32.totalorder %s86, %s100
      %p102 = scmp.eq.s32.totalorder %s20, 0
      %p103 = por %p101, %p102
      %s105 = sadd.s32 %s104, 1
      %p108 = scmp.eq.s32.totalorder %s14, 1
      %p109 = scmp.ne.s32.totalorder %s104, %s106
      %p110 = scmp.eq.s32.totalorder %s14, 0
      %p111 = por %p109, %p110
      %p112 = scmp.ne.s32.totalorder %s104, %s106
      %p113 = scmp.eq.s32.totalorder %s19, 1
      %p114 = por %p112, %p113
      %p115 = scmp.ne.s32.totalorder %s106, %s107
      %p116 = scmp.eq.s32.totalorder %s19, 0
      %p117 = por %p115, %p116
      %p118 = scmp.ne.s32.totalorder %s106, %s107
      %p119 = scmp.eq.s32.totalorder %s20, 1
      %p120 = por %p118, %p119
      %p122 = scmp.ne.s32.totalorder %s107, %s121
      %p123 = scmp.eq.s32.totalorder %s20, 0
      %p124 = por %p122, %p123
      %s126 = sadd.s32 %s125, 1
      %p129 = scmp.eq.s32.totalorder %s14, 1
      %p130 = scmp.ne.s32.totalorder %s125, %s127
      %p131 = scmp.eq.s32.totalorder %s14, 0
      %p132 = por %p130, %p131
      %p133 = scmp.ne.s32.totalorder %s125, %s127
      %p134 = scmp.eq.s32.totalorder %s19, 1
      %p135 = por %p133, %p134
      %p136 = scmp.ne.s32.totalorder %s127, %s128
      %p137 = scmp.eq.s32.totalorder %s19, 0
      %p138 = por %p136, %p137
      %p139 = scmp.ne.s32.totalorder %s127, %s128
      %p140 = scmp.eq.s32.totalorder %s20, 1
      %p141 = por %p139, %p140
      %p143 = scmp.ne.s32.totalorder %s128, %s142
      %p144 = scmp.eq.s32.totalorder %s20, 0
      %p145 = por %p143, %p144
      %s146 = ssub.s32 %s21, %s33
      %s147 = ssub.s32 %s22, %s29
      %s148 = sor.u32 %s146, %s147
      %p149 = scmp.eq.s32.totalorder %s148, 0
      %s151 = sadd.s32 %s150, 1
      %s152 = scalar_select %p149, %s150, %s151
      %p155 = pneg %p149
      %p156 = scmp.eq.s32.totalorder %s14, 1
      %p157 = por %p155, %p156
      %p158 = scmp.ne.s32.totalorder %s150, %s153
      %p159 = scmp.eq.s32.totalorder %s14, 0
      %p160 = por %p158, %p159
      %p161 = scmp.ne.s32.totalorder %s150, %s153
      %p162 = scmp.eq.s32.totalorder %s19, 1
      %p163 = por %p161, %p162
      %p164 = scmp.ne.s32.totalorder %s153, %s154
      %p165 = scmp.eq.s32.totalorder %s19, 0
      %p166 = por %p164, %p165
      %p167 = scmp.ne.s32.totalorder %s153, %s154
      %p168 = scmp.eq.s32.totalorder %s20, 1
      %p169 = por %p167, %p168
      %p171 = scmp.ne.s32.totalorder %s154, %s170
      %p172 = scmp.eq.s32.totalorder %s20, 0
      %p173 = por %p171, %p172
      %p174 = scmp.le.s32.totalorder 1, %s14
      %p175 = scmp.lt.s32.totalorder %s14, 3
      %p176 = pnand %p174, %p175
      %p177 = pneg %p176
      // Predicated region
      $region9: #{tpu_custom_call.1} parent=5 // pred_check
        _
      $region10: #{tpu_custom_call.1} parent=5 // pred_check_branch
        %179 = sbr.rel (%p176) target = $region12
      $region11: #{tpu_custom_call.1} parent=5 // pred_region
        %s180 = ssub.s32 %s14, 1
        // Predicated region
        $region13: #{tpu_custom_call.1} parent=11 // pred_check
          %p181 = pneg %p75
        $region14: #{tpu_custom_call.1} parent=11 // pred_check_branch
          %183 = sbr.rel (%p181) target = $region16
        $region15: #{tpu_custom_call.1} parent=11 // pred_region
          _
        $region16: #{tpu_custom_call.1} parent=11 // pred_fallthru
          _
        // Predicated region
        $region17: #{tpu_custom_call.1} parent=11 // pred_check
          %p184 = pneg %p96
        $region18: #{tpu_custom_call.1} parent=11 // pred_check_branch
          %186 = sbr.rel (%p184) target = $region20
        $region19: #{tpu_custom_call.1} parent=11 // pred_region
          _
        $region20: #{tpu_custom_call.1} parent=11 // pred_fallthru
          _
        // Predicated region
        $region21: #{tpu_custom_call.1} parent=11 // pred_check
          %p187 = pneg %p117
        $region22: #{tpu_custom_call.1} parent=11 // pred_check_branch
          %189 = sbr.rel (%p187) target = $region24
        $region23: #{tpu_custom_call.1} parent=11 // pred_region
          _
        $region24: #{tpu_custom_call.1} parent=11 // pred_fallthru
          _
        // Predicated region
        $region25: #{tpu_custom_call.1} parent=11 // pred_check
          %p190 = pneg %p138
        $region26: #{tpu_custom_call.1} parent=11 // pred_check_branch
          %192 = sbr.rel (%p190) target = $region28
        $region27: #{tpu_custom_call.1} parent=11 // pred_region
          _
        $region28: #{tpu_custom_call.1} parent=11 // pred_fallthru
          _
      $region12: #{tpu_custom_call.1} parent=5 // pred_fallthru
        _
      %p193 = scmp.lt.s32.totalorder %s14, 2
      // Predicated region
      $region29: #{tpu_custom_call.1} parent=5 // pred_check
        %p194 = pneg %p193
      $region30: #{tpu_custom_call.1} parent=5 // pred_check_branch
        %196 = sbr.rel (%p194) target = $region32
      $region31: #{tpu_custom_call.1} parent=5 // pred_region
        // Predicated region
        $region33: #{tpu_custom_call.1} parent=31 // pred_check
          %p197 = pneg %p48
        $region34: #{tpu_custom_call.1} parent=31 // pred_check_branch
          %199 = sbr.rel (%p197) target = $region36
        $region35: #{tpu_custom_call.1} parent=31 // pred_region
          %p200 = scmp.lt.s32.totalorder %s21, 1
          %s201 = scalar_select %p200, %s21, 1
          %p202 = scmp.lt.s32.totalorder %s22, 0
          %s203 = scalar_select %p202, %s22, 0
          %s204 = smul.addr %s201, 4
          %s205 = sadd.s32 %s203, %s204
          %s206 = smul.addr %s205, 4
          %s207 = scalar_lea.vmem %s0, %s206
        $region36: #{tpu_custom_call.1} parent=31 // pred_fallthru
          _
      $region32: #{tpu_custom_call.1} parent=5 // pred_fallthru
        _
      %p208 = scmp.le.s32.totalorder 1, %s14
      %p209 = scmp.lt.s32.totalorder %s14, 3
      %p210 = pnand %p208, %p209
      %p211 = pneg %p210
      // Predicated region
      $region37: #{tpu_custom_call.1} parent=5 // pred_check
        _
      $region38: #{tpu_custom_call.1} parent=5 // pred_check_branch
        %213 = sbr.rel (%p210) target = $region40
      $region39: #{tpu_custom_call.1} parent=5 // pred_region
        %s214 = ssub.s32 %s14, 1
        %p215 = scmp.lt.s32.totalorder %s23, 1
        %s216 = scalar_select %p215, %s23, 1
        %p217 = scmp.lt.s32.totalorder %s24, 0
        %s218 = scalar_select %p217, %s24, 0
        %s219 = smul.addr %s216, 4
        %s220 = sadd.s32 %s218, %s219
        %s221 = smul.addr %s220, 4
        %s222 = scalar_lea.vmem %s0, %s221
        %p223 = pneg %p54
        %p224 = pneg %p51
        %p225 = pneg %p75
        %p226 = pneg %p72
        %p227 = pneg %p96
        %p228 = pneg %p93
        %p229 = pneg %p117
        %p230 = pneg %p114
        %p231 = pneg %p138
        %p232 = pneg %p135
        %p233 = pneg %p166
        %p234 = pneg %p163
        %s235 = sand.u32 %s153, 1
        %s236 = scalar_lea.sflag [#allocation3], %s235
        %s237 = sand.u32 %s153, 1
        %s238 = smul.addr %s237, 16
        %s239 = scalar_lea.vmem [#allocation2], %s238
        %p240 = scmp.lt.s32.totalorder %s23, 1
        %s241 = scalar_select %p240, %s23, 1
        %p242 = scmp.lt.s32.totalorder %s24, 0
        %s243 = scalar_select %p242, %s24, 0
        %s244 = smul.addr %s241, 4
        %s245 = sadd.s32 %s243, %s244
        %s246 = smul.addr %s245, 4
        %s247 = scalar_lea.vmem %s0, %s246
        %v249 = vld [vmem:[%s247] sm:$0xf]
        %v250 = vld [vmem:[%s247 + $0x4] sm:$0xf]
        %v251 = vld [vmem:[%s247 + $0x8] sm:$0xf]
        %v252 = vld [vmem:[%s247 + $0xc] sm:$0xf]
        %v253 = vld [vmem:[%s1] sm:$0xf]
        %v254 = vld [vmem:[%s1 + $0x4] sm:$0xf]
        %v255 = vld [vmem:[%s1 + $0x8] sm:$0xf]
        %v256 = vld [vmem:[%s1 + $0xc] sm:$0xf]
        %258 = vset.pattern.permute.xlu0 0
        %259 = vperm.xlu0 %258, %v253
        %v260 = vpop.permute.xlu0 %259
        %v263 = vunpack.c.l.s4 839922192
        %v264 = vunpack.c.0.s8 %v263
        %v265 = vlaneseq
        %v266 = vshrl.u32 %v265, 7
        %v267 = vsub.s32 %v264, %v266
        %v268 = vrot.slane %v260, %v267
        %270 = vset.pattern.permute.xlu0 0
        %271 = vperm.xlu0 %270, %v254
        %v272 = vpop.permute.xlu0 %271
        %v275 = vunpack.c.l.s4 839922192
        %v276 = vunpack.c.0.s8 %v275
        %v277 = vlaneseq
        %v278 = vshrl.u32 %v277, 7
        %v279 = vsub.s32 %v276, %v278
        %v280 = vrot.slane %v272, %v279
        %282 = vset.pattern.permute.xlu0 0
        %283 = vperm.xlu0 %282, %v255
        %v284 = vpop.permute.xlu0 %283
        %v287 = vunpack.c.l.s4 839922192
        %v288 = vunpack.c.0.s8 %v287
        %v289 = vlaneseq
        %v290 = vshrl.u32 %v289, 7
        %v291 = vsub.s32 %v288, %v290
        %v292 = vrot.slane %v284, %v291
        %294 = vset.pattern.permute.xlu0 0
        %295 = vperm.xlu0 %294, %v256
        %v296 = vpop.permute.xlu0 %295
        %v299 = vunpack.c.l.s4 839922192
        %v300 = vunpack.c.0.s8 %v299
        %v301 = vlaneseq
        %v302 = vshrl.u32 %v301, 7
        %v303 = vsub.s32 %v300, %v302
        %v304 = vrot.slane %v296, %v303
        %v305 = vmul.bf16 %v249, %v268
        %v306 = vmul.bf16 %v250, %v280
        %v307 = vmul.bf16 %v251, %v292
        %v308 = vmul.bf16 %v252, %v304
        %v309 = vld [vmem:[%s2] sm:$0xf]
        %v310 = vld [vmem:[%s2 + $0x4] sm:$0xf]
        %v311 = vld [vmem:[%s2 + $0x8] sm:$0x1]
        %v315 = vunpack.c.l.b16 %v309
        %v316 = vunpack.c.l.b16 %v310
        %v317 = vunpack.c.l.b16 %v311
        %v318 = vpack.c.b16 %v316, %v315
        %v319 = vpack.c.b16 %v317, %v317
        %v324 = vunpack.c.l.b16 %v305
        %v325 = vunpack.c.l.b16 %v306
        %v326 = vunpack.c.l.b16 %v307
        %v327 = vunpack.c.l.b16 %v308
        %v328 = vpack.c.b16 %v325, %v324
        %v329 = vpack.c.b16 %v327, %v326
        %vm332 = vcmask 261120
        %v334 = vsel %vm332, %v318, 0
        %v337 = vsel %vm332, %v319, 0
        %339 = vmatprep.subr.bf16.mxu0 0
        %340 = vmatpush1.bf16.msra.mxu0 0
        %341 = vmatprep.subr.bf16.mxu0 0
        %342 = vmatpush1.bf16.msra.mxu0 0
        %343 = vmatprep.subr.bf16.mxu0 0
        %344 = vmatpush1.bf16.msra.mxu0 0
        %345 = vmatprep.subr.bf16.mxu0 0
        %346 = vmatpush1.bf16.msra.mxu0 0
        %347 = vmatprep.subr.bf16.mxu0 0
        %348 = vmatpush1.bf16.msra.mxu0 0
        %349 = vmatprep.subr.bf16.mxu0 0
        %350 = vmatpush1.bf16.msra.mxu0 0
        %351 = vmatprep.subr.bf16.mxu0 0
        %352 = vmatpush1.bf16.msra.mxu0 %v329
        %353 = vmatprep.subr.bf16.mxu0 0
        %354 = vmatpush1.bf16.msra.mxu0 %v328
        %355 = vmatprep.subr.bf16.mxu0 0
        %356 = vmatpush2.bf16.msra.mxu0 0
        %357 = vmatprep.subr.bf16.mxu0 0
        %358 = vmatpush2.bf16.msra.mxu0 0
        %359 = vmatprep.subr.bf16.mxu0 0
        %360 = vmatpush2.bf16.msra.mxu0 0
        %361 = vmatprep.subr.bf16.mxu0 0
        %362 = vmatpush2.bf16.msra.mxu0 0
        %363 = vmatprep.subr.bf16.mxu0 0
        %364 = vmatpush2.bf16.msra.mxu0 0
        %365 = vmatprep.subr.bf16.mxu0 0
        %366 = vmatpush2.bf16.msra.mxu0 0
        %367 = vmatprep.subr.bf16.mxu0 0
        %368 = vmatpush2.bf16.msra.mxu0 0
        %369 = vmatprep.subr.bf16.mxu0 0
        %370 = vmatpush2.bf16.msra.mxu0 0
        %371 = vmatprep.mubr.bf16.mxu0 0
        %372 = vmatmul.mubr.bf16.gmra.mxu0 %v334
        %v373 = vpop.f32.mrf.mxu0
        %v374 = vadd.f32 0.0, %v373
        %v375 = vpop.f32.mrf.mxu0
        %v376 = vpop.f32.mrf.mxu0
        %v377 = vadd.f32 0.0, %v376
        %v378 = vpop.f32.mrf.mxu0
        %379 = vmatprep.mubr.bf16.mxu0 0
        %380 = vmatmul.mubr.bf16.gmra.mxu0 %v337
        %v381 = vpop.f32.mrf.mxu0
        %v382 = vadd.f32 0.0, %v381
        %v383 = vpop.f32.mrf.mxu0
        %v384 = vpop.f32.mrf.mxu0
        %v385 = vpop.f32.mrf.mxu0
        %386 = vdwg.mxu0
        %v387 = vld [vmem:[%s3] sm:$0xf]
        %v388 = vld [vmem:[%s3 + $0x4] sm:$0xf]
        %v389 = vld [vmem:[%s3 + $0x8] sm:$0x1]
        %v393 = vunpack.c.l.b16 %v387
        %v394 = vunpack.c.l.b16 %v388
        %v395 = vunpack.c.l.b16 %v389
        %v396 = vpack.c.b16 %v394, %v393
        %v397 = vpack.c.b16 %v395, %v395
        %v399 = vsel %vm332, %v396, 0
        %v402 = vsel %vm332, %v397, 0
        %404 = vmatprep.subr.bf16.mxu0 0
        %405 = vmatpush1.bf16.msra.mxu0 0
        %406 = vmatprep.subr.bf16.mxu0 0
        %407 = vmatpush1.bf16.msra.mxu0 0
        %408 = vmatprep.subr.bf16.mxu0 0
        %409 = vmatpush1.bf16.msra.mxu0 0
        %410 = vmatprep.subr.bf16.mxu0 0
        %411 = vmatpush1.bf16.msra.mxu0 0
        %412 = vmatprep.subr.bf16.mxu0 0
        %413 = vmatpush1.bf16.msra.mxu0 0
        %414 = vmatprep.subr.bf16.mxu0 0
        %415 = vmatpush1.bf16.msra.mxu0 0
        %416 = vmatprep.subr.bf16.mxu0 0
        %417 = vmatpush1.bf16.msra.mxu0 %v329
        %418 = vmatprep.subr.bf16.mxu0 0
        %419 = vmatpush1.bf16.msra.mxu0 %v328
        %420 = vmatprep.subr.bf16.mxu0 0
        %421 = vmatpush2.bf16.msra.mxu0 0
        %422 = vmatprep.subr.bf16.mxu0 0
        %423 = vmatpush2.bf16.msra.mxu0 0
        %424 = vmatprep.subr.bf16.mxu0 0
        %425 = vmatpush2.bf16.msra.mxu0 0
        %426 = vmatprep.subr.bf16.mxu0 0
        %427 = vmatpush2.bf16.msra.mxu0 0
        %428 = vmatprep.subr.bf16.mxu0 0
        %429 = vmatpush2.bf16.msra.mxu0 0
        %430 = vmatprep.subr.bf16.mxu0 0
        %431 = vmatpush2.bf16.msra.mxu0 0
        %432 = vmatprep.subr.bf16.mxu0 0
        %433 = vmatpush2.bf16.msra.mxu0 0
        %434 = vmatprep.subr.bf16.mxu0 0
        %435 = vmatpush2.bf16.msra.mxu0 0
        %436 = vmatprep.mubr.bf16.mxu0 0
        %437 = vmatmul.mubr.bf16.gmra.mxu0 %v399
        %v438 = vpop.f32.mrf.mxu0
        %v439 = vadd.f32 0.0, %v438
        %v440 = vpop.f32.mrf.mxu0
        %v441 = vpop.f32.mrf.mxu0
        %v442 = vadd.f32 0.0, %v441
        %v443 = vpop.f32.mrf.mxu0
        %444 = vmatprep.mubr.bf16.mxu0 0
        %445 = vmatmul.mubr.bf16.gmra.mxu0 %v402
        %v446 = vpop.f32.mrf.mxu0
        %v447 = vadd.f32 0.0, %v446
        %v448 = vpop.f32.mrf.mxu0
        %v449 = vpop.f32.mrf.mxu0
        %v450 = vpop.f32.mrf.mxu0
        %451 = vdwg.mxu0
        %v452 = vmul.f32 %v374, %v374
        %v453 = vmul.f32 %v377, %v377
        %v454 = vmul.f32 %v382, %v382
        %v455 = vmul.f32 %v439, %v439
        %v456 = vmul.f32 %v442, %v442
        %v457 = vmul.f32 %v447, %v447
        %v458 = vadd.f32 %v452, %v455
        %v459 = vadd.f32 %v453, %v456
        %v460 = vadd.f32 %v454, %v457
        %v461 = vrsqrt.pop %v458
        %v462 = vmul.f32 %v458, %v461
        %vm463 = vcmp.eq.f32.partialorder %v458, inf
        %v464 = vsel %vm463, %v458, %v462
        %vm465 = vcmp.eq.f32.partialorder %v458, 0.0
        %v466 = vand.u32 %v458, 2147483648
        %v467 = vsel %vm465, %v466, %v464
        %v468 = vrsqrt.pop %v459
        %v469 = vmul.f32 %v459, %v468
        %vm470 = vcmp.eq.f32.partialorder %v459, inf
        %v471 = vsel %vm470, %v459, %v469
        %vm472 = vcmp.eq.f32.partialorder %v459, 0.0
        %v473 = vand.u32 %v459, 2147483648
        %v474 = vsel %vm472, %v473, %v471
        %v475 = vrsqrt.pop %v460
        %v476 = vmul.f32 %v460, %v475
        %vm477 = vcmp.eq.f32.partialorder %v460, inf
        %v478 = vsel %vm477, %v460, %v476
        %vm479 = vcmp.eq.f32.partialorder %v460, 0.0
        %v480 = vand.u32 %v460, 2147483648
        %v481 = vsel %vm479, %v480, %v478
        %v482 = vld [vmem:[%s4] sm:$0xff]
        %v483 = vld [vmem:[%s4 + $0x8] sm:$0xff]
        %vm484 = vcmask 138240
        %v486 = vsel %vm484, %v482, 0
        %v489 = vsel %vm484, %v483, 0
        %vm491 = vcmask 1040384
        %v493 = vsel %vm491, %v481, 0
        %495 = vmatprep.subr.mxu0 0.0
        %496 = vmatpush1.msra.mxu0 0.0
        %497 = vmatprep.subr.mxu0 0.0
        %498 = vmatpush1.msra.mxu0 0.0
        %499 = vmatprep.subr.mxu0 0.0
        %500 = vmatpush1.msra.mxu0 0.0
        %501 = vmatprep.subr.mxu0 0.0
        %502 = vmatpush1.msra.mxu0 0.0
        %503 = vmatprep.subr.mxu0 0.0
        %504 = vmatpush1.msra.mxu0 0.0
        %505 = vmatprep.subr.mxu0 0.0
        %506 = vmatpush1.msra.mxu0 0.0
        %507 = vmatprep.subr.mxu0 0.0
        %508 = vmatpush1.msra.mxu0 0.0
        %509 = vmatprep.subr.mxu0 0.0
        %510 = vmatpush1.msra.mxu0 0.0
        %511 = vmatprep.subr.mxu0 0.0
        %512 = vmatpush1.msra.mxu0 0.0
        %513 = vmatprep.subr.mxu0 0.0
        %514 = vmatpush1.msra.mxu0 0.0
        %515 = vmatprep.subr.mxu0 0.0
        %516 = vmatpush1.msra.mxu0 0.0
        %517 = vmatprep.subr.mxu0 0.0
        %518 = vmatpush1.msra.mxu0 0.0
        %519 = vmatprep.subr.mxu0 0.0
        %520 = vmatpush1.msra.mxu0 0.0
        %521 = vmatprep.subr.mxu0 0.0
        %522 = vmatpush1.msra.mxu0 %v493
        %523 = vmatprep.subr.mxu0 0.0
        %524 = vmatpush1.msra.mxu0 %v474
        %525 = vmatprep.subr.mxu0 0.0
        %526 = vmatpush1.msra.mxu0 %v467
        %527 = vmatprep.subr.mxu0 0.0
        %528 = vmatpush2.msra.mxu0 0.0
        %529 = vmatprep.subr.mxu0 0.0
        %530 = vmatpush2.msra.mxu0 0.0
        %531 = vmatprep.subr.mxu0 0.0
        %532 = vmatpush2.msra.mxu0 0.0
        %533 = vmatprep.subr.mxu0 0.0
        %534 = vmatpush2.msra.mxu0 0.0
        %535 = vmatprep.subr.mxu0 0.0
        %536 = vmatpush2.msra.mxu0 0.0
        %537 = vmatprep.subr.mxu0 0.0
        %538 = vmatpush2.msra.mxu0 0.0
        %539 = vmatprep.subr.mxu0 0.0
        %540 = vmatpush2.msra.mxu0 0.0
        %541 = vmatprep.subr.mxu0 0.0
        %542 = vmatpush2.msra.mxu0 0.0
        %543 = vmatprep.subr.mxu0 0.0
        %544 = vmatpush2.msra.mxu0 0.0
        %545 = vmatprep.subr.mxu0 0.0
        %546 = vmatpush2.msra.mxu0 0.0
        %547 = vmatprep.subr.mxu0 0.0
        %548 = vmatpush2.msra.mxu0 0.0
        %549 = vmatprep.subr.mxu0 0.0
        %550 = vmatpush2.msra.mxu0 0.0
        %551 = vmatprep.subr.mxu0 0.0
        %552 = vmatpush2.msra.mxu0 0.0
        %553 = vmatprep.subr.mxu0 0.0
        %554 = vmatpush2.msra.mxu0 0.0
        %555 = vmatprep.subr.mxu0 0.0
        %556 = vmatpush2.msra.mxu0 0.0
        %557 = vmatprep.subr.mxu0 0.0
        %558 = vmatpush2.msra.mxu0 0.0
        %559 = vmatprep.mubr.f32.mxu0 0.0
        %560 = vmatmul.mubr.f32.gmra.mxu0 %v486
        %v561 = vpop.f32.mrf.mxu0
        %v562 = vadd.f32 0.0, %v561
        %v563 = vpop.f32.mrf.mxu0
        %564 = vmatprep.mubr.f32.mxu0 0.0
        %565 = vmatmul.mubr.f32.gmra.mxu0 %v489
        %v566 = vpop.f32.mrf.mxu0
        %v567 = vadd.f32 0.0, %v566
        %v568 = vpop.f32.mrf.mxu0
        %569 = vdwg.mxu0
        %vm570 = vcmask 162816
        %571 = vst.msk [vmem:[%s239] sm:$0xff] %vm570, %v562
        %572 = vst.msk [vmem:[%s239 + $0x8] sm:$0xff] %vm570, %v567
        %s573 = sand.u32 %s153, 1
        %s574 = scalar_lea.sflag [#allocation3], %s573
        %s575 = sand.u32 %s153, 1
        %s576 = smul.addr %s575, 16
        %s577 = scalar_lea.vmem [#allocation2], %s576
        // Predicated region
        $region41: #{tpu_custom_call.1} parent=39 // pred_check
          %p578 = pneg %p163
        $region42: #{tpu_custom_call.1} parent=39 // pred_check_branch
          %580 = sbr.rel (%p578) target = $region44
        $region43: #{tpu_custom_call.1} parent=39 // pred_region
          %s582 = ssub.s32 256, 256
          %583 = vsyncadd %s574, %s582
          %s584 = smul.addr %s23, 2
          %s585 = sadd.s32 %s24, %s584
          %s586 = smul.addr %s585, 128
          %s587 = scalar_lea.hbm %s5, %s586
          %s588 = sshll.u32 %s577, 4
          %s589 = int_to_ptr.vmem [resolvable:$true] %s588
          %594 = dma.vmem_to_hbm [thread:$0]  %s589, 256, %s587, %s574, 128, 128, 8
        $region44: #{tpu_custom_call.1} parent=39 // pred_fallthru
          _
      $region40: #{tpu_custom_call.1} parent=5 // pred_fallthru
        _
      %p595 = scmp.le.s32.totalorder 2, %s14
      // Predicated region
      $region45: #{tpu_custom_call.1} parent=5 // pred_check
        %p596 = pneg %p595
      $region46: #{tpu_custom_call.1} parent=5 // pred_check_branch
        %598 = sbr.rel (%p596) target = $region48
      $region47: #{tpu_custom_call.1} parent=5 // pred_region
        %s599 = ssub.s32 %s14, 2
        // Predicated region
        $region49: #{tpu_custom_call.1} parent=47 // pred_check
          %p600 = pneg %p169
        $region50: #{tpu_custom_call.1} parent=47 // pred_check_branch
          %602 = sbr.rel (%p600) target = $region52
        $region51: #{tpu_custom_call.1} parent=47 // pred_region
          %s603 = sand.u32 %s154, 1
          %s604 = scalar_lea.sflag [#allocation3], %s603
          %s605 = sand.u32 %s154, 1
          %s606 = smul.addr %s605, 16
          %s607 = scalar_lea.vmem [#allocation2], %s606
          %608 = dma.done %s604, 256
        $region52: #{tpu_custom_call.1} parent=47 // pred_fallthru
          _
      $region48: #{tpu_custom_call.1} parent=5 // pred_fallthru
        _
    $region6: #{tpu_custom_call.1} parent=1 // loop_footer
      %s18 = sadd.s32 1, %s14
    $region7: #{tpu_custom_call.1} parent=1 // loop_footer_branch
      %13 = sbr.rel target = $region3
    $region8: #{tpu_custom_call.1} parent=1 // loop_exit
      _
    %609 = vsyncpa [#allocation3], 1
    %s610 = scalar_lea.sflag [#allocation3], 1
    %611 = vsyncpa %s610, 1

// kernel: tpu_custom_call.1
$region0: #{tpu_custom_call.1}
  #allocation0 [shape = 'u32[]', space=smem, size = 0x4, offset = 0x4, fixed_abs, tag = 'smem constant byte address 0x4 - core index']
  #allocation1 [shape = 'u32[144,128]{1,0:T(1,128)}', space=vmem, size = 0x12000, scoped, tag = 'internal scratch']
  %s0 = inlined_call_operand.vmem [shape: bf16[2,32,20], index: 0, kind: input, shape index: {}]
  %s1 = inlined_call_operand.vmem [shape: bf16[32,1], index: 1, kind: input, shape index: {}]
  %s2 = inlined_call_operand.vmem [shape: bf16[17,32], index: 2, kind: input, shape index: {}]
  %s3 = inlined_call_operand.vmem [shape: bf16[17,32], index: 3, kind: input, shape index: {}]
  %s4 = inlined_call_operand.vmem [shape: f32[16,17], index: 4, kind: input, shape index: {}]
  %s5 = inlined_call_operand.hbm [shape: f32[2,16,20], index: 5, kind: output, shape index: {}]
  %s6 = sld [smem:[#allocation0]]
  $region53: #{tpu_custom_call.1} parent=0
    _
  %s8 = ssub.s32 1, %s6
  %s9 = scalar_select 0, %s8, %s6
  $region1: #{tpu_custom_call.1} parent=0
    #allocation2 [shape = 'u8[16384]{0}', space=vmem, size = 0x4000, scoped, tag = 'output window, operand 0']
    #allocation3 [shape = 's32[2]{0}', space=sflag, size = 0x8, scoped, tag = 'scoped memory for tpu_custom_call.1']
    %10 = vsyncpa [#allocation3], 0
    %s11 = scalar_lea.sflag [#allocation3], 1
    %12 = vsyncpa %s11, 0
    loop: start=0, step=1, limit=4
    $region2: #{tpu_custom_call.1} parent=1 // loop_pre_header
      _
    $region3: #{tpu_custom_call.1} parent=1 // loop_header
      %s14 = sphi 0, %s18
      %p15 = scmp.ge.s32.totalorder %s14, 4
      %s21 = sphi 0, %s33
      %s22 = sphi 0, %s29
      %s23 = sphi 0, %s21
      %s24 = sphi 0, %s22
      %s25 = sphi 0, %s23
      %s26 = sphi 0, %s24
      %s38 = sphi 0, %s40
      %s41 = sphi 0, %s38
      %s42 = sphi 0, %s41
      %s58 = sphi 0, %s42
      %s62 = sphi 0, %s62
      %s64 = sphi 0, %s62
      %s65 = sphi 0, %s64
      %s79 = sphi 0, %s65
      %s83 = sphi 0, %s83
      %s85 = sphi 0, %s83
      %s86 = sphi 0, %s85
      %s100 = sphi 0, %s86
      %s104 = sphi 0, %s104
      %s106 = sphi 0, %s104
      %s107 = sphi 0, %s106
      %s121 = sphi 0, %s107
      %s125 = sphi 0, %s125
      %s127 = sphi 0, %s125
      %s128 = sphi 0, %s127
      %s142 = sphi 0, %s128
      %s150 = sphi 0, %s152
      %s153 = sphi 0, %s150
      %s154 = sphi 0, %s153
      %s170 = sphi 0, %s154
    $region4: #{tpu_custom_call.1} parent=1 // loop_header_branch
      %17 = sbr.rel (%p15) target = $region8
    $region5: #{tpu_custom_call.1} parent=1 // loop_body
      %s19 = ssub.s32 %s14, 1
      %s20 = ssub.s32 %s14, 2
      %s27 = sadd.s32 1, %s22
      %p28 = scmp.ge.s32.totalorder %s27, 1
      %s29 = scalar_select %p28, 0, %s27
      %s30 = sadd.s32 1, %s21
      %s31 = scalar_select %p28, %s30, %s21
      %p32 = scmp.ge.s32.totalorder %s31, 2
      %s33 = scalar_select %p32, 0, %s31
      %s34 = ssub.s32 %s21, %s33
      %s35 = ssub.s32 %s22, %s29
      %s36 = sor.u32 %s34, %s35
      %p37 = scmp.eq.s32.totalorder %s36, 0
      %s39 = sadd.s32 %s38, 1
      %s40 = scalar_select %p37, %s38, %s39
      %p43 = pneg %p37
      %p44 = scmp.eq.s32.totalorder %s14, 1
      %p45 = por %p43, %p44
      %p46 = scmp.ne.s32.totalorder %s38, %s41
      %p47 = scmp.eq.s32.totalorder %s14, 0
      %p48 = por %p46, %p47
      %p49 = scmp.ne.s32.totalorder %s38, %s41
      %p50 = scmp.eq.s32.totalorder %s19, 1
      %p51 = por %p49, %p50
      %p52 = scmp.ne.s32.totalorder %s41, %s42
      %p53 = scmp.eq.s32.totalorder %s19, 0
      %p54 = por %p52, %p53
      %p55 = scmp.ne.s32.totalorder %s41, %s42
      %p56 = scmp.eq.s32.totalorder %s20, 1
      %p57 = por %p55, %p56
      %p59 = scmp.ne.s32.totalorder %s42, %s58
      %p60 = scmp.eq.s32.totalorder %s20, 0
      %p61 = por %p59, %p60
      %s63 = sadd.s32 %s62, 1
      %p66 = scmp.eq.s32.totalorder %s14, 1
      %p67 = scmp.ne.s32.totalorder %s62, %s64
      %p68 = scmp.eq.s32.totalorder %s14, 0
      %p69 = por %p67, %p68
      %p70 = scmp.ne.s32.totalorder %s62, %s64
      %p71 = scmp.eq.s32.totalorder %s19, 1
      %p72 = por %p70, %p71
      %p73 = scmp.ne.s32.totalorder %s64, %s65
      %p74 = scmp.eq.s32.totalorder %s19, 0
      %p75 = por %p73, %p74
      %p76 = scmp.ne.s32.totalorder %s64, %s65
      %p77 = scmp.eq.s32.totalorder %s20, 1
      %p78 = por %p76, %p77
      %p80 = scmp.ne.s32.totalorder %s65, %s79
      %p81 = scmp.eq.s32.totalorder %s20, 0
      %p82 = por %p80, %p81
      %s84 = sadd.s32 %s83, 1
      %p87 = scmp.eq.s32.totalorder %s14, 1
      %p88 = scmp.ne.s32.totalorder %s83, %s85
      %p89 = scmp.eq.s32.totalorder %s14, 0
      %p90 = por %p88, %p89
      %p91 = scmp.ne.s32.totalorder %s83, %s85
      %p92 = scmp.eq.s32.totalorder %s19, 1
      %p93 = por %p91, %p92
      %p94 = scmp.ne.s32.totalorder %s85, %s86
      %p95 = scmp.eq.s32.totalorder %s19, 0
      %p96 = por %p94, %p95
      %p97 = scmp.ne.s32.totalorder %s85, %s86
      %p98 = scmp.eq.s32.totalorder %s20, 1
      %p99 = por %p97, %p98
      %p101 = scmp.ne.s32.totalorder %s86, %s100
      %p102 = scmp.eq.s32.totalorder %s20, 0
      %p103 = por %p101, %p102
      %s105 = sadd.s32 %s104, 1
      %p108 = scmp.eq.s32.totalorder %s14, 1
      %p109 = scmp.ne.s32.totalorder %s104, %s106
      %p110 = scmp.eq.s32.totalorder %s14, 0
      %p111 = por %p109, %p110
      %p112 = scmp.ne.s32.totalorder %s104, %s106
      %p113 = scmp.eq.s32.totalorder %s19, 1
      %p114 = por %p112, %p113
      %p115 = scmp.ne.s32.totalorder %s106, %s107
      %p116 = scmp.eq.s32.totalorder %s19, 0
      %p117 = por %p115, %p116
      %p118 = scmp.ne.s32.totalorder %s106, %s107
      %p119 = scmp.eq.s32.totalorder %s20, 1
      %p120 = por %p118, %p119
      %p122 = scmp.ne.s32.totalorder %s107, %s121
      %p123 = scmp.eq.s32.totalorder %s20, 0
      %p124 = por %p122, %p123
      %s126 = sadd.s32 %s125, 1
      %p129 = scmp.eq.s32.totalorder %s14, 1
      %p130 = scmp.ne.s32.totalorder %s125, %s127
      %p131 = scmp.eq.s32.totalorder %s14, 0
      %p132 = por %p130, %p131
      %p133 = scmp.ne.s32.totalorder %s125, %s127
      %p134 = scmp.eq.s32.totalorder %s19, 1
      %p135 = por %p133, %p134
      %p136 = scmp.ne.s32.totalorder %s127, %s128
      %p137 = scmp.eq.s32.totalorder %s19, 0
      %p138 = por %p136, %p137
      %p139 = scmp.ne.s32.totalorder %s127, %s128
      %p140 = scmp.eq.s32.totalorder %s20, 1
      %p141 = por %p139, %p140
      %p143 = scmp.ne.s32.totalorder %s128, %s142
      %p144 = scmp.eq.s32.totalorder %s20, 0
      %p145 = por %p143, %p144
      %s146 = ssub.s32 %s21, %s33
      %s147 = ssub.s32 %s22, %s29
      %s148 = sor.u32 %s146, %s147
      %p149 = scmp.eq.s32.totalorder %s148, 0
      %s151 = sadd.s32 %s150, 1
      %s152 = scalar_select %p149, %s150, %s151
      %p155 = pneg %p149
      %p156 = scmp.eq.s32.totalorder %s14, 1
      %p157 = por %p155, %p156
      %p158 = scmp.ne.s32.totalorder %s150, %s153
      %p159 = scmp.eq.s32.totalorder %s14, 0
      %p160 = por %p158, %p159
      %p161 = scmp.ne.s32.totalorder %s150, %s153
      %p162 = scmp.eq.s32.totalorder %s19, 1
      %p163 = por %p161, %p162
      %p164 = scmp.ne.s32.totalorder %s153, %s154
      %p165 = scmp.eq.s32.totalorder %s19, 0
      %p166 = por %p164, %p165
      %p167 = scmp.ne.s32.totalorder %s153, %s154
      %p168 = scmp.eq.s32.totalorder %s20, 1
      %p169 = por %p167, %p168
      %p171 = scmp.ne.s32.totalorder %s154, %s170
      %p172 = scmp.eq.s32.totalorder %s20, 0
      %p173 = por %p171, %p172
      %p174 = scmp.le.s32.totalorder 1, %s14
      %p175 = scmp.lt.s32.totalorder %s14, 3
      %p176 = pnand %p174, %p175
      %p177 = pneg %p176
      // Predicated region
      $region9: #{tpu_custom_call.1} parent=5 // pred_check
        _
      $region10: #{tpu_custom_call.1} parent=5 // pred_check_branch
        %179 = sbr.rel (%p176) target = $region12
      $region11: #{tpu_custom_call.1} parent=5 // pred_region
        %s180 = ssub.s32 %s14, 1
        // Predicated region
        $region13: #{tpu_custom_call.1} parent=11 // pred_check
          %p181 = pneg %p75
        $region14: #{tpu_custom_call.1} parent=11 // pred_check_branch
          %183 = sbr.rel (%p181) target = $region16
        $region15: #{tpu_custom_call.1} parent=11 // pred_region
          _
        $region16: #{tpu_custom_call.1} parent=11 // pred_fallthru
          _
        // Predicated region
        $region17: #{tpu_custom_call.1} parent=11 // pred_check
          %p184 = pneg %p96
        $region18: #{tpu_custom_call.1} parent=11 // pred_check_branch
          %186 = sbr.rel (%p184) target = $region20
        $region19: #{tpu_custom_call.1} parent=11 // pred_region
          _
        $region20: #{tpu_custom_call.1} parent=11 // pred_fallthru
          _
        // Predicated region
        $region21: #{tpu_custom_call.1} parent=11 // pred_check
          %p187 = pneg %p117
        $region22: #{tpu_custom_call.1} parent=11 // pred_check_branch
          %189 = sbr.rel (%p187) target = $region24
        $region23: #{tpu_custom_call.1} parent=11 // pred_region
          _
        $region24: #{tpu_custom_call.1} parent=11 // pred_fallthru
          _
        // Predicated region
        $region25: #{tpu_custom_call.1} parent=11 // pred_check
          %p190 = pneg %p138
        $region26: #{tpu_custom_call.1} parent=11 // pred_check_branch
          %192 = sbr.rel (%p190) target = $region28
        $region27: #{tpu_custom_call.1} parent=11 // pred_region
          _
        $region28: #{tpu_custom_call.1} parent=11 // pred_fallthru
          _
      $region12: #{tpu_custom_call.1} parent=5 // pred_fallthru
        _
      %p193 = scmp.lt.s32.totalorder %s14, 2
      // Predicated region
      $region29: #{tpu_custom_call.1} parent=5 // pred_check
        %p194 = pneg %p193
      $region30: #{tpu_custom_call.1} parent=5 // pred_check_branch
        %196 = sbr.rel (%p194) target = $region32
      $region31: #{tpu_custom_call.1} parent=5 // pred_region
        // Predicated region
        $region33: #{tpu_custom_call.1} parent=31 // pred_check
          %p197 = pneg %p48
        $region34: #{tpu_custom_call.1} parent=31 // pred_check_branch
          %199 = sbr.rel (%p197) target = $region36
        $region35: #{tpu_custom_call.1} parent=31 // pred_region
          %p200 = scmp.lt.s32.totalorder %s21, 1
          %s201 = scalar_select %p200, %s21, 1
          %p202 = scmp.lt.s32.totalorder %s22, 0
          %s203 = scalar_select %p202, %s22, 0
          %s204 = smul.addr %s201, 4
          %s205 = sadd.s32 %s203, %s204
          %s206 = smul.addr %s205, 4
          %s207 = scalar_lea.vmem %s0, %s206
        $region36: #{tpu_custom_call.1} parent=31 // pred_fallthru
          _
      $region32: #{tpu_custom_call.1} parent=5 // pred_fallthru
        _
      %p208 = scmp.le.s32.totalorder 1, %s14
      %p209 = scmp.lt.s32.totalorder %s14, 3
      %p210 = pnand %p208, %p209
      %p211 = pneg %p210
      // Predicated region
      $region37: #{tpu_custom_call.1} parent=5 // pred_check
        _
      $region38: #{tpu_custom_call.1} parent=5 // pred_check_branch
        %213 = sbr.rel (%p210) target = $region40
      $region39: #{tpu_custom_call.1} parent=5 // pred_region
        %s214 = ssub.s32 %s14, 1
        %p215 = scmp.lt.s32.totalorder %s23, 1
        %s216 = scalar_select %p215, %s23, 1
        %p217 = scmp.lt.s32.totalorder %s24, 0
        %s218 = scalar_select %p217, %s24, 0
        %s219 = smul.addr %s216, 4
        %s220 = sadd.s32 %s218, %s219
        %s221 = smul.addr %s220, 4
        %s222 = scalar_lea.vmem %s0, %s221
        %p223 = pneg %p54
        %p224 = pneg %p51
        %p225 = pneg %p75
        %p226 = pneg %p72
        %p227 = pneg %p96
        %p228 = pneg %p93
        %p229 = pneg %p117
        %p230 = pneg %p114
        %p231 = pneg %p138
        %p232 = pneg %p135
        %p233 = pneg %p166
        %p234 = pneg %p163
        %s235 = sand.u32 %s153, 1
        %s236 = scalar_lea.sflag [#allocation3], %s235
        %s237 = sand.u32 %s153, 1
        %s238 = smul.addr %s237, 16
        %s239 = scalar_lea.vmem [#allocation2], %s238
        %p240 = scmp.lt.s32.totalorder %s23, 1
        %s241 = scalar_select %p240, %s23, 1
        %p242 = scmp.lt.s32.totalorder %s24, 0
        %s243 = scalar_select %p242, %s24, 0
        %s244 = smul.addr %s241, 4
        %s245 = sadd.s32 %s243, %s244
        %s246 = smul.addr %s245, 4
        %s247 = scalar_lea.vmem %s0, %s246
        %v249 = vld [vmem:[%s247] sm:$0xf]
        %v250 = vld [vmem:[%s247 + $0x4] sm:$0xf]
        %v251 = vld [vmem:[%s247 + $0x8] sm:$0xf]
        %v252 = vld [vmem:[%s247 + $0xc] sm:$0xf]
        %v253 = vld [vmem:[%s1] sm:$0xf]
        %v254 = vld [vmem:[%s1 + $0x4] sm:$0xf]
        %v255 = vld [vmem:[%s1 + $0x8] sm:$0xf]
        %v256 = vld [vmem:[%s1 + $0xc] sm:$0xf]
        %258 = vset.pattern.permute.xlu0 0
        %259 = vperm.xlu0 %258, %v253
        %v260 = vpop.permute.xlu0 %259
        %v263 = vunpack.c.l.s4 839922192
        %v264 = vunpack.c.0.s8 %v263
        %v265 = vlaneseq
        %v266 = vshrl.u32 %v265, 7
        %v267 = vsub.s32 %v264, %v266
        %v268 = vrot.slane %v260, %v267
        %270 = vset.pattern.permute.xlu0 0
        %271 = vperm.xlu0 %270, %v254
        %v272 = vpop.permute.xlu0 %271
        %v275 = vunpack.c.l.s4 839922192
        %v276 = vunpack.c.0.s8 %v275
        %v277 = vlaneseq
        %v278 = vshrl.u32 %v277, 7
        %v279 = vsub.s32 %v276, %v278
        %v280 = vrot.slane %v272, %v279
        %282 = vset.pattern.permute.xlu0 0
        %283 = vperm.xlu0 %282, %v255
        %v284 = vpop.permute.xlu0 %283
        %v287 = vunpack.c.l.s4 839922192
        %v288 = vunpack.c.0.s8 %v287
        %v289 = vlaneseq
        %v290 = vshrl.u32 %v289, 7
        %v291 = vsub.s32 %v288, %v290
        %v292 = vrot.slane %v284, %v291
        %294 = vset.pattern.permute.xlu0 0
        %295 = vperm.xlu0 %294, %v256
        %v296 = vpop.permute.xlu0 %295
        %v299 = vunpack.c.l.s4 839922192
        %v300 = vunpack.c.0.s8 %v299
        %v301 = vlaneseq
        %v302 = vshrl.u32 %v301, 7
        %v303 = vsub.s32 %v300, %v302
        %v304 = vrot.slane %v296, %v303
        %v305 = vmul.bf16 %v249, %v268
        %v306 = vmul.bf16 %v250, %v280
        %v307 = vmul.bf16 %v251, %v292
        %v308 = vmul.bf16 %v252, %v304
        %v309 = vld [vmem:[%s2] sm:$0xf]
        %v310 = vld [vmem:[%s2 + $0x4] sm:$0xf]
        %v311 = vld [vmem:[%s2 + $0x8] sm:$0x1]
        %v315 = vunpack.c.l.b16 %v309
        %v316 = vunpack.c.l.b16 %v310
        %v317 = vunpack.c.l.b16 %v311
        %v318 = vpack.c.b16 %v316, %v315
        %v319 = vpack.c.b16 %v317, %v317
        %v324 = vunpack.c.l.b16 %v305
        %v325 = vunpack.c.l.b16 %v306
        %v326 = vunpack.c.l.b16 %v307
        %v327 = vunpack.c.l.b16 %v308
        %v328 = vpack.c.b16 %v325, %v324
        %v329 = vpack.c.b16 %v327, %v326
        %vm332 = vcmask 261120
        %v334 = vsel %vm332, %v318, 0
        %v337 = vsel %vm332, %v319, 0
        %339 = vmatprep.subr.bf16.mxu0 0
        %340 = vmatpush1.bf16.msra.mxu0 0
        %341 = vmatprep.subr.bf16.mxu0 0
        %342 = vmatpush1.bf16.msra.mxu0 0
        %343 = vmatprep.subr.bf16.mxu0 0
        %344 = vmatpush1.bf16.msra.mxu0 0
        %345 = vmatprep.subr.bf16.mxu0 0
        %346 = vmatpush1.bf16.msra.mxu0 0
        %347 = vmatprep.subr.bf16.mxu0 0
        %348 = vmatpush1.bf16.msra.mxu0 0
        %349 = vmatprep.subr.bf16.mxu0 0
        %350 = vmatpush1.bf16.msra.mxu0 0
        %351 = vmatprep.subr.bf16.mxu0 0
        %352 = vmatpush1.bf16.msra.mxu0 %v329
        %353 = vmatprep.subr.bf16.mxu0 0
        %354 = vmatpush1.bf16.msra.mxu0 %v328
        %355 = vmatprep.subr.bf16.mxu0 0
        %356 = vmatpush2.bf16.msra.mxu0 0
        %357 = vmatprep.subr.bf16.mxu0 0
        %358 = vmatpush2.bf16.msra.mxu0 0
        %359 = vmatprep.subr.bf16.mxu0 0
        %360 = vmatpush2.bf16.msra.mxu0 0
        %361 = vmatprep.subr.bf16.mxu0 0
        %362 = vmatpush2.bf16.msra.mxu0 0
        %363 = vmatprep.subr.bf16.mxu0 0
        %364 = vmatpush2.bf16.msra.mxu0 0
        %365 = vmatprep.subr.bf16.mxu0 0
        %366 = vmatpush2.bf16.msra.mxu0 0
        %367 = vmatprep.subr.bf16.mxu0 0
        %368 = vmatpush2.bf16.msra.mxu0 0
        %369 = vmatprep.subr.bf16.mxu0 0
        %370 = vmatpush2.bf16.msra.mxu0 0
        %371 = vmatprep.mubr.bf16.mxu0 0
        %372 = vmatmul.mubr.bf16.gmra.mxu0 %v334
        %v373 = vpop.f32.mrf.mxu0
        %v374 = vadd.f32 0.0, %v373
        %v375 = vpop.f32.mrf.mxu0
        %v376 = vpop.f32.mrf.mxu0
        %v377 = vadd.f32 0.0, %v376
        %v378 = vpop.f32.mrf.mxu0
        %379 = vmatprep.mubr.bf16.mxu0 0
        %380 = vmatmul.mubr.bf16.gmra.mxu0 %v337
        %v381 = vpop.f32.mrf.mxu0
        %v382 = vadd.f32 0.0, %v381
        %v383 = vpop.f32.mrf.mxu0
        %v384 = vpop.f32.mrf.mxu0
        %v385 = vpop.f32.mrf.mxu0
        %386 = vdwg.mxu0
        %v387 = vld [vmem:[%s3] sm:$0xf]
        %v388 = vld [vmem:[%s3 + $0x4] sm:$0xf]
        %v389 = vld [vmem:[%s3 + $0x8] sm:$0x1]
        %v393 = vunpack.c.l.b16 %v387
        %v394 = vunpack.c.l.b16 %v388
        %v395 = vunpack.c.l.b16 %v389
        %v396 = vpack.c.b16 %v394, %v393
        %v397 = vpack.c.b16 %v395, %v395
        %v399 = vsel %vm332, %v396, 0
        %v402 = vsel %vm332, %v397, 0
        %404 = vmatprep.subr.bf16.mxu0 0
        %405 = vmatpush1.bf16.msra.mxu0 0
        %406 = vmatprep.subr.bf16.mxu0 0
        %407 = vmatpush1.bf16.msra.mxu0 0
        %408 = vmatprep.subr.bf16.mxu0 0
        %409 = vmatpush1.bf16.msra.mxu0 0
        %410 = vmatprep.subr.bf16.mxu0 0
        %411 = vmatpush1.bf16.msra.mxu0 0
        %412 = vmatprep.subr.bf16.mxu0 0
        %413 = vmatpush1.bf16.msra.mxu0 0
        %414 = vmatprep.subr.bf16.mxu0 0
        %415 = vmatpush1.bf16.msra.mxu0 0
        %416 = vmatprep.subr.bf16.mxu0 0
        %417 = vmatpush1.bf16.msra.mxu0 %v329
        %418 = vmatprep.subr.bf16.mxu0 0
        %419 = vmatpush1.bf16.msra.mxu0 %v328
        %420 = vmatprep.subr.bf16.mxu0 0
        %421 = vmatpush2.bf16.msra.mxu0 0
        %422 = vmatprep.subr.bf16.mxu0 0
        %423 = vmatpush2.bf16.msra.mxu0 0
        %424 = vmatprep.subr.bf16.mxu0 0
        %425 = vmatpush2.bf16.msra.mxu0 0
        %426 = vmatprep.subr.bf16.mxu0 0
        %427 = vmatpush2.bf16.msra.mxu0 0
        %428 = vmatprep.subr.bf16.mxu0 0
        %429 = vmatpush2.bf16.msra.mxu0 0
        %430 = vmatprep.subr.bf16.mxu0 0
        %431 = vmatpush2.bf16.msra.mxu0 0
        %432 = vmatprep.subr.bf16.mxu0 0
        %433 = vmatpush2.bf16.msra.mxu0 0
        %434 = vmatprep.subr.bf16.mxu0 0
        %435 = vmatpush2.bf16.msra.mxu0 0
        %436 = vmatprep.mubr.bf16.mxu0 0
        %437 = vmatmul.mubr.bf16.gmra.mxu0 %v399
        %v438 = vpop.f32.mrf.mxu0
        %v439 = vadd.f32 0.0, %v438
        %v440 = vpop.f32.mrf.mxu0
        %v441 = vpop.f32.mrf.mxu0
        %v442 = vadd.f32 0.0, %v441
        %v443 = vpop.f32.mrf.mxu0
        %444 = vmatprep.mubr.bf16.mxu0 0
        %445 = vmatmul.mubr.bf16.gmra.mxu0 %v402
        %v446 = vpop.f32.mrf.mxu0
        %v447 = vadd.f32 0.0, %v446
        %v448 = vpop.f32.mrf.mxu0
        %v449 = vpop.f32.mrf.mxu0
        %v450 = vpop.f32.mrf.mxu0
        %451 = vdwg.mxu0
        %v452 = vmul.f32 %v374, %v374
        %v453 = vmul.f32 %v377, %v377
        %v454 = vmul.f32 %v382, %v382
        %v455 = vmul.f32 %v439, %v439
        %v456 = vmul.f32 %v442, %v442
        %v457 = vmul.f32 %v447, %v447
        %v458 = vadd.f32 %v452, %v455
        %v459 = vadd.f32 %v453, %v456
        %v460 = vadd.f32 %v454, %v457
        %v461 = vrsqrt.pop %v458
        %v462 = vmul.f32 %v458, %v461
        %vm463 = vcmp.eq.f32.partialorder %v458, inf
        %v464 = vsel %vm463, %v458, %v462
        %vm465 = vcmp.eq.f32.partialorder %v458, 0.0
        %v466 = vand.u32 %v458, 2147483648
        %v467 = vsel %vm465, %v466, %v464
        %v468 = vrsqrt.pop %v459
        %v469 = vmul.f32 %v459, %v468
        %vm470 = vcmp.eq.f32.partialorder %v459, inf
        %v471 = vsel %vm470, %v459, %v469
        %vm472 = vcmp.eq.f32.partialorder %v459, 0.0
        %v473 = vand.u32 %v459, 2147483648
        %v474 = vsel %vm472, %v473, %v471
        %v475 = vrsqrt.pop %v460
        %v476 = vmul.f32 %v460, %v475
        %vm477 = vcmp.eq.f32.partialorder %v460, inf
        %v478 = vsel %vm477, %v460, %v476
        %vm479 = vcmp.eq.f32.partialorder %v460, 0.0
        %v480 = vand.u32 %v460, 2147483648
        %v481 = vsel %vm479, %v480, %v478
        %v482 = vld [vmem:[%s4] sm:$0xff]
        %v483 = vld [vmem:[%s4 + $0x8] sm:$0xff]
        %vm484 = vcmask 138240
        %v486 = vsel %vm484, %v482, 0
        %v489 = vsel %vm484, %v483, 0
        %vm491 = vcmask 1040384
        %v493 = vsel %vm491, %v481, 0
        %495 = vmatprep.subr.mxu0 0.0
        %496 = vmatpush1.msra.mxu0 0.0
        %497 = vmatprep.subr.mxu0 0.0
        %498 = vmatpush1.msra.mxu0 0.0
        %499 = vmatprep.subr.mxu0 0.0
        %500 = vmatpush1.msra.mxu0 0.0
        %501 = vmatprep.subr.mxu0 0.0
        %502 = vmatpush1.msra.mxu0 0.0
        %503 = vmatprep.subr.mxu0 0.0
        %504 = vmatpush1.msra.mxu0 0.0
        %505 = vmatprep.subr.mxu0 0.0
        %506 = vmatpush1.msra.mxu0 0.0
        %507 = vmatprep.subr.mxu0 0.0
        %508 = vmatpush1.msra.mxu0 0.0
        %509 = vmatprep.subr.mxu0 0.0
        %510 = vmatpush1.msra.mxu0 0.0
        %511 = vmatprep.subr.mxu0 0.0
        %512 = vmatpush1.msra.mxu0 0.0
        %513 = vmatprep.subr.mxu0 0.0
        %514 = vmatpush1.msra.mxu0 0.0
        %515 = vmatprep.subr.mxu0 0.0
        %516 = vmatpush1.msra.mxu0 0.0
        %517 = vmatprep.subr.mxu0 0.0
        %518 = vmatpush1.msra.mxu0 0.0
        %519 = vmatprep.subr.mxu0 0.0
        %520 = vmatpush1.msra.mxu0 0.0
        %521 = vmatprep.subr.mxu0 0.0
        %522 = vmatpush1.msra.mxu0 %v493
        %523 = vmatprep.subr.mxu0 0.0
        %524 = vmatpush1.msra.mxu0 %v474
        %525 = vmatprep.subr.mxu0 0.0
        %526 = vmatpush1.msra.mxu0 %v467
        %527 = vmatprep.subr.mxu0 0.0
        %528 = vmatpush2.msra.mxu0 0.0
        %529 = vmatprep.subr.mxu0 0.0
        %530 = vmatpush2.msra.mxu0 0.0
        %531 = vmatprep.subr.mxu0 0.0
        %532 = vmatpush2.msra.mxu0 0.0
        %533 = vmatprep.subr.mxu0 0.0
        %534 = vmatpush2.msra.mxu0 0.0
        %535 = vmatprep.subr.mxu0 0.0
        %536 = vmatpush2.msra.mxu0 0.0
        %537 = vmatprep.subr.mxu0 0.0
        %538 = vmatpush2.msra.mxu0 0.0
        %539 = vmatprep.subr.mxu0 0.0
        %540 = vmatpush2.msra.mxu0 0.0
        %541 = vmatprep.subr.mxu0 0.0
        %542 = vmatpush2.msra.mxu0 0.0
        %543 = vmatprep.subr.mxu0 0.0
        %544 = vmatpush2.msra.mxu0 0.0
        %545 = vmatprep.subr.mxu0 0.0
        %546 = vmatpush2.msra.mxu0 0.0
        %547 = vmatprep.subr.mxu0 0.0
        %548 = vmatpush2.msra.mxu0 0.0
        %549 = vmatprep.subr.mxu0 0.0
        %550 = vmatpush2.msra.mxu0 0.0
        %551 = vmatprep.subr.mxu0 0.0
        %552 = vmatpush2.msra.mxu0 0.0
        %553 = vmatprep.subr.mxu0 0.0
        %554 = vmatpush2.msra.mxu0 0.0
        %555 = vmatprep.subr.mxu0 0.0
        %556 = vmatpush2.msra.mxu0 0.0
        %557 = vmatprep.subr.mxu0 0.0
        %558 = vmatpush2.msra.mxu0 0.0
        %559 = vmatprep.mubr.f32.mxu0 0.0
        %560 = vmatmul.mubr.f32.gmra.mxu0 %v486
        %v561 = vpop.f32.mrf.mxu0
        %v562 = vadd.f32 0.0, %v561
        %v563 = vpop.f32.mrf.mxu0
        %564 = vmatprep.mubr.f32.mxu0 0.0
        %565 = vmatmul.mubr.f32.gmra.mxu0 %v489
        %v566 = vpop.f32.mrf.mxu0
        %v567 = vadd.f32 0.0, %v566
        %v568 = vpop.f32.mrf.mxu0
        %569 = vdwg.mxu0
        %vm570 = vcmask 162816
        %571 = vst.msk [vmem:[%s239] sm:$0xff] %vm570, %v562
        %572 = vst.msk [vmem:[%s239 + $0x8] sm:$0xff] %vm570, %v567
        %s573 = sand.u32 %s153, 1
        %s574 = scalar_lea.sflag [#allocation3], %s573
        %s575 = sand.u32 %s153, 1
        %s576 = smul.addr %s575, 16
        %s577 = scalar_lea.vmem [#allocation2], %s576
        // Predicated region
        $region41: #{tpu_custom_call.1} parent=39 // pred_check
          %p578 = pneg %p163
        $region42: #{tpu_custom_call.1} parent=39 // pred_check_branch
          %580 = sbr.rel (%p578) target = $region44
        $region43: #{tpu_custom_call.1} parent=39 // pred_region
          %s582 = ssub.s32 256, 256
          %583 = vsyncadd %s574, %s582
          %s584 = smul.addr %s23, 2
          %s585 = sadd.s32 %s24, %s584
          %s586 = smul.addr %s585, 128
          %s587 = scalar_lea.hbm %s5, %s586
          %s588 = sshll.u32 %s577, 4
          %s589 = int_to_ptr.vmem [resolvable:$true] %s588
          %594 = dma.vmem_to_hbm [thread:$0]  %s589, 256, %s587, %s574, 128, 128, 8
        $region44: #{tpu_custom_call.1} parent=39 // pred_fallthru
          _
      $region40: #{tpu_custom_call.1} parent=5 // pred_fallthru
        _
      %p595 = scmp.le.s32.totalorder 2, %s14
      // Predicated region
      $region45: #{tpu_custom_call.1} parent=5 // pred_check
        %p596 = pneg %p595
      $region46: #{tpu_custom_call.1} parent=5 // pred_check_branch
        %598 = sbr.rel (%p596) target = $region48
      $region47: #{tpu_custom_call.1} parent=5 // pred_region
        %s599 = ssub.s32 %s14, 2
        // Predicated region
        $region49: #{tpu_custom_call.1} parent=47 // pred_check
          %p600 = pneg %p169
        $region50: #{tpu_custom_call.1} parent=47 // pred_check_branch
          %602 = sbr.rel (%p600) target = $region52
        $region51: #{tpu_custom_call.1} parent=47 // pred_region
          %s603 = sand.u32 %s154, 1
          %s604 = scalar_lea.sflag [#allocation3], %s603
          %s605 = sand.u32 %s154, 1
          %s606 = smul.addr %s605, 16
          %s607 = scalar_lea.vmem [#allocation2], %s606
          %608 = dma.done %s604, 256
        $region52: #{tpu_custom_call.1} parent=47 // pred_fallthru
          _
      $region48: #{tpu_custom_call.1} parent=5 // pred_fallthru
        _
    $region6: #{tpu_custom_call.1} parent=1 // loop_footer
      %s18 = sadd.s32 1, %s14
    $region7: #{tpu_custom_call.1} parent=1 // loop_footer_branch
      %13 = sbr.rel target = $region3
    $region8: #{tpu_custom_call.1} parent=1 // loop_exit
      _
    %609 = vsyncpa [#allocation3], 1
    %s610 = scalar_lea.sflag [#allocation3], 1
    %611 = vsyncpa %s610, 1

</llo_original>
